<compile_context>
chip_gen: v7x
topology: tpu7x:2x2x1
jax: 0.10.0
libtpu: 0.0.40
codegen_flags: <defaults>
</compile_context>

<pallas_src>
import functools

import jax
import jax.numpy as jnp
from jax.experimental import pallas as pl
from jax.experimental.pallas import tpu as pltpu


def _round_up(x, m):
    return ((x + m - 1) // m) * m


def _has_bf16_vpu():
    """v6e / v7x have bf16-native VPUs; v5e (and older) do not."""
    try:
        kind = jax.devices()[0].device_kind.lower()
    except Exception:
        return False
    return any(tag in kind for tag in ("v6", "v7", "7x"))


def _mlp_poly_kernel(num_layers, min_num_sides, n_classes, im_sq, bf16_vpu,
                     x_ref, *refs):
    # refs = [w0'', shift0, w1', shift1, ..., w_head', b_head, packed_out]
    n_param = 2 * num_layers + 2
    p = refs[:n_param]
    out_ref = refs[n_param]

    # torch.where(x != 255, 0, x) followed by the first Linear is rewritten as a
    # 0/1 indicator feeding a first-layer weight with the 255 factor folded in.
    # Exact because pixel values are integer-valued floats <= 255.
    x = (x_ref[...] == 255.0).astype(jnp.bfloat16)

    # hidden MLP: Linear(bias=False) + eval-BatchNorm folded into (w', shift) -> ReLU
    for li in range(num_layers):
        w = p[2 * li + 0][...]          # bf16 (in, out), BN scale (and 255) pre-folded
        shift = p[2 * li + 1][...]      # f32  (1, out)
        h = jnp.dot(x, w, preferred_element_type=jnp.float32)   # f32 MXU accumulate
        if bf16_vpu:
            # v6e/v7x: bf16-native VPU -> keep element-wise add+ReLU in bf16
            x = jnp.maximum(h.astype(jnp.bfloat16) + shift.astype(jnp.bfloat16), 0.0)
        else:
            # v5e: no bf16 VALU -> element-wise math in f32, cast only for the MXU
            x = jnp.maximum(h + shift, 0.0).astype(jnp.bfloat16)

    # fused heads: columns [0, n_classes) are fc1+batch_norm1 logits,
    # column n_classes is fc2+batch_norm2 (area), all in one MXU matmul.
    w_head = p[2 * num_layers + 0][...]     # bf16 (hidden, n_classes + 1)
    b_head = p[2 * num_layers + 1][...]     # f32  (1, n_classes + 1)
    h = jnp.dot(x, w_head, preferred_element_type=jnp.float32) + b_head

    side_logits = h[:, :n_classes]
    area = h[:, n_classes:n_classes + 1]

    # side_predictions = argmax(dim=1) + min_num_sides  (first occurrence on ties)
    m = jnp.max(side_logits, axis=1, keepdims=True)
    idx = jax.lax.broadcasted_iota(jnp.int32, side_logits.shape, 1)
    cand = jnp.where(side_logits == m, idx, n_classes)
    side_pred = (jnp.min(cand, axis=1, keepdims=True)
                 + min_num_sides).astype(jnp.float32)   # small ints -> exact in f32

    # areas = clamp(area, 0, 1) * im_width**2
    area_pred = jnp.clip(area, 0.0, 1.0) * im_sq

    # lane-dense packed output (TB, 128): lane 0 = side prediction, lanes 1..127
    # carry the area (only lane 1 is read back by the wrapper).
    col = jax.lax.broadcasted_iota(jnp.int32, out_ref.shape, 1)
    out_ref[...] = jnp.where(col == 0, side_pred, area_pred)


def mlp_poly_forward(poly_ims, fused_params, *, num_layers, min_num_sides,
                     max_num_sides, im_width):
    """Eval-mode forward. Returns (side_predictions[B,1] int32, areas[B,1] float32)."""
    B, C, H, W = poly_ims.shape
    HW = H * W
    n_classes = max_num_sides - min_num_sides + 1

    # glue: channel 0 + Flatten(start_dim=1); stream activations as bf16
    # (exact for integer-valued pixel floats <= 255).
    x = poly_ims[:, 0, :, :].reshape(B, HW).astype(jnp.bfloat16)

    # Batch tiling: tiles up to 512 rows to amortize per-step pipeline overhead,
    # while keeping >= 2 grid steps for mid/large batches (v7x megacore sharding).
    B8 = _round_up(B, 8)
    TB_PREF = 512
    if B8 <= 32:
        TB = B8                                       # tiny batch: single step
    else:
        n_tiles = max(2, pl.cdiv(B8, TB_PREF))
        TB = _round_up(pl.cdiv(B8, n_tiles), 8)
    B_pad = _round_up(B8, TB)
    if B_pad != B:
        x = jnp.pad(x, ((0, B_pad - B), (0, 0)))

    grid = (B_pad // TB,)

    # weights/shifts: full-array blocks with a constant index_map -> stay resident
    # in VMEM across batch tiles (no re-DMA per grid step).
    def const_spec(a):
        return pl.BlockSpec(a.shape, lambda i: (0, 0))

    in_specs = [pl.BlockSpec((TB, HW), lambda i: (i, 0))]
    in_specs += [const_spec(a) for a in fused_params]

    out_shape = jax.ShapeDtypeStruct((B_pad, 128), jnp.float32)
    out_specs = pl.BlockSpec((TB, 128), lambda i: (i, 0))

    kernel = functools.partial(
        _mlp_poly_kernel, num_layers, min_num_sides, n_classes,
        float(im_width * im_width), _has_bf16_vpu())

    packed = pl.pallas_call(
        kernel,
        out_shape=out_shape,
        grid=grid,
        in_specs=in_specs,
        out_specs=out_specs,
        compiler_params=pltpu.CompilerParams(
            dimension_semantics=("parallel",),   # batch tiles shard across TCs (v7x)
            vmem_limit_bytes=32 << 20,           # sized for TB<=512 (fits v7x 64 MiB)
        ),
    )(x, *fused_params)

    side_pred = packed[:B, 0:1].astype(jnp.int32)
    areas = packed[:B, 1:2]
    return side_pred, areas


def init_params(key, layers_dims, max_num_sides=14, min_num_sides=3, eps=1e-5):
    """Deterministic synthetic parameters. BatchNorm1d (eval) represented as scale/shift."""
    params = []

    def bn_fold(k, feat):
        k1, k2, k3, k4 = jax.random.split(k, 4)
        gamma = jax.random.uniform(k1, (1, feat), jnp.float32, 0.8, 1.2)
        beta = jax.random.uniform(k2, (1, feat), jnp.float32, -0.1, 0.1)
        rmean = jax.random.normal(k3, (1, feat), jnp.float32) * 0.1
        rvar = jax.random.uniform(k4, (1, feat), jnp.float32, 0.5, 1.5)
        scale = gamma / jnp.sqrt(rvar + eps)
        shift = beta - rmean * scale
        return scale, shift

    for (fin, fout) in layers_dims:
        key, kw, kb = jax.random.split(key, 3)
        bound = 1.0 / jnp.sqrt(jnp.float32(fin))
        w = jax.random.uniform(kw, (fin, fout), jnp.float32, -bound, bound)  # (in, out)
        scale, shift = bn_fold(kb, fout)
        params += [w, scale, shift]

    n_classes = max_num_sides - min_num_sides + 1
    hidden = layers_dims[-1][1]

    key, kw1, kb1, kw2, kb2 = jax.random.split(key, 5)
    bound = 1.0 / jnp.sqrt(jnp.float32(hidden))
    w1 = jax.random.uniform(kw1, (hidden, n_classes), jnp.float32, -bound, bound)
    s1, b1 = bn_fold(kb1, n_classes)
    w2 = jax.random.uniform(kw2, (1, hidden), jnp.float32, -bound, bound)  # (1, in)
    s2, b2 = bn_fold(kb2, 1)
    params += [w1, s1, b1, w2, s2, b2]
    return params


def fold_params(params, num_layers):
    """Fold BN scale (and the 255 pixel value) into weights, fuse heads, cast to bf16.

    Pure parameter algebra (done once in the wrapper):
        (x @ W) * scale + shift == x @ (W * scale) + shift
        mask-to-255 followed by W0 == 0/1 indicator followed by (255 * W0)
        side head and 1-unit area head concatenated column-wise into one matmul.
    """
    fused = []
    for li in range(num_layers):
        w, scale, shift = params[3 * li], params[3 * li + 1], params[3 * li + 2]
        wf = w * scale
        if li == 0:
            wf = wf * 255.0            # 255-valued kept pixels -> 0/1 indicator input
        fused.append(wf.astype(jnp.bfloat16))      # (in, out) bf16
        fused.append(shift.astype(jnp.float32))    # (1, out)  f32

    base = 3 * num_layers
    w1, s1, b1 = params[base + 0], params[base + 1], params[base + 2]
    w2, s2, b2 = params[base + 3], params[base + 4], params[base + 5]
    w_head = jnp.concatenate([w1 * s1, w2.T * s2], axis=1)     # (hidden, n_classes+1)
    b_head = jnp.concatenate([b1, b2], axis=1)                 # (1, n_classes+1)
    fused.append(w_head.astype(jnp.bfloat16))
    fused.append(b_head.astype(jnp.float32))
    return fused


if __name__ == "__main__":
    # Small shapes consistent with the module: image 16x16 -> 256 flattened features,
    # hidden layers 256->512->1024 so the fused fc heads see 1024 features.
    B, C, H, W = 2, 4, 16, 16
    IM_WIDTH = 16
    MAX_SIDES, MIN_SIDES = 14, 3
    layers_dims = [(H * W, 512), (512, 1024)]

    key = jax.random.PRNGKey(0)
    key, k_img = jax.random.split(key)
    u = jax.random.uniform(k_img, (B, C, H, W), jnp.float32)
    # some pixels exactly 255 (kept by the mask), the rest arbitrary integer-valued
    # floats (zeroed by the mask)
    poly_ims = jnp.where(u > 0.6, 255.0, jnp.floor(u * 200.0)).astype(jnp.float32)

    raw_params = init_params(key, layers_dims, MAX_SIDES, MIN_SIDES)
    params = fold_params(raw_params, num_layers=len(layers_dims))

    side_pred, areas = mlp_poly_forward(
        poly_ims, params,
        num_layers=len(layers_dims),
        min_num_sides=MIN_SIDES,
        max_num_sides=MAX_SIDES,
        im_width=IM_WIDTH,
    )
    jax.block_until_ready((side_pred, areas))

    # Sanity checks on semantics (eval-mode prediction path).
    assert side_pred.shape == (B, 1) and side_pred.dtype == jnp.int32
    assert areas.shape == (B, 1) and areas.dtype == jnp.float32
    assert bool(jnp.all(side_pred >= MIN_SIDES)) and bool(jnp.all(side_pred <= MAX_SIDES))
    assert bool(jnp.all(areas >= 0.0)) and bool(jnp.all(areas <= IM_WIDTH * IM_WIDTH))

    # TODO(synk): training-mode branch (CrossEntropyLoss / L1Loss, BN batch-stat
    # updates) is not implemented; this kernel covers the eval/prediction path only.
    print("KERNEL_OK")
</pallas_src>

<mosaic_0001>
module attributes {stable_mosaic.version = 11 : i64} {
  func.func @_mlp_poly_kernel(%arg0: i32, %arg1: memref<8x256xbf16, #tpu.memory_space<vmem>>, %arg2: memref<256x512xbf16, #tpu.memory_space<vmem>>, %arg3: memref<1x512xf32, #tpu.memory_space<vmem>>, %arg4: memref<512x1024xbf16, #tpu.memory_space<vmem>>, %arg5: memref<1x1024xf32, #tpu.memory_space<vmem>>, %arg6: memref<1024x13xbf16, #tpu.memory_space<vmem>>, %arg7: memref<1x13xf32, #tpu.memory_space<vmem>>, %arg8: memref<8x128xf32, #tpu.memory_space<vmem>>) attributes {dimension_semantics = [#tpu.dimension_semantics<parallel>], iteration_bounds = array<i64: 1>, scalar_prefetch = 0 : i64, scratch_operands = 0 : i64, tpu.core_type = #tpu.core_type<tc>, window_params = [{transform_indices = @transform_0, window_bounds = array<i64: 8, 256>}, {pipeline_mode = #tpu.pipeline_mode<synchronous>, transform_indices = @transform_1, window_bounds = array<i64: 256, 512>}, {pipeline_mode = #tpu.pipeline_mode<synchronous>, transform_indices = @transform_2, window_bounds = array<i64: 1, 512>}, {pipeline_mode = #tpu.pipeline_mode<synchronous>, transform_indices = @transform_3, window_bounds = array<i64: 512, 1024>}, {pipeline_mode = #tpu.pipeline_mode<synchronous>, transform_indices = @transform_4, window_bounds = array<i64: 1, 1024>}, {pipeline_mode = #tpu.pipeline_mode<synchronous>, transform_indices = @transform_5, window_bounds = array<i64: 1024, 13>}, {pipeline_mode = #tpu.pipeline_mode<synchronous>, transform_indices = @transform_6, window_bounds = array<i64: 1, 13>}, {transform_indices = @transform_7, window_bounds = array<i64: 8, 128>}]} {
    %c0 = arith.constant 0 : index
    %c0_0 = arith.constant 0 : index
    %0 = vector.load %arg1[%c0, %c0_0] : memref<8x256xbf16, #tpu.memory_space<vmem>>, vector<8x256xbf16>
    %cst = arith.constant 2.550000e+02 : bf16
    %1 = vector.broadcast %cst : bf16 to vector<8x256xbf16>
    %2 = arith.cmpf oeq, %0, %1 : vector<8x256xbf16>
    %3 = arith.extui %2 : vector<8x256xi1> to vector<8x256xi32>
    %4 = arith.sitofp %3 : vector<8x256xi32> to vector<8x256xf32>
    %5 = arith.truncf %4 : vector<8x256xf32> to vector<8x256xbf16>
    %c0_1 = arith.constant 0 : index
    %c0_2 = arith.constant 0 : index
    %6 = vector.load %arg2[%c0_1, %c0_2] : memref<256x512xbf16, #tpu.memory_space<vmem>>, vector<256x512xbf16>
    %c0_3 = arith.constant 0 : index
    %c0_4 = arith.constant 0 : index
    %7 = vector.load %arg3[%c0_3, %c0_4] : memref<1x512xf32, #tpu.memory_space<vmem>>, vector<1x512xf32>
    %cst_5 = arith.constant dense<0.000000e+00> : vector<8x512xf32>
    %8 = tpu.matmul %5, %6, %cst_5 {dimension_numbers = #tpu.dot_dimension_numbers<[1], [0], [0], [1], [0, 0, 1, 1], [], []>} : vector<8x256xbf16>, vector<256x512xbf16>, vector<8x512xf32> -> vector<8x512xf32>
    %9 = vector.broadcast %7 : vector<1x512xf32> to vector<8x512xf32>
    %10 = arith.addf %8, %9 : vector<8x512xf32>
    %cst_6 = arith.constant 0.000000e+00 : f32
    %11 = vector.broadcast %cst_6 : f32 to vector<8x512xf32>
    %12 = arith.maximumf %10, %11 : vector<8x512xf32>
    %13 = arith.truncf %12 : vector<8x512xf32> to vector<8x512xbf16>
    %c0_7 = arith.constant 0 : index
    %c0_8 = arith.constant 0 : index
    %14 = vector.load %arg4[%c0_7, %c0_8] : memref<512x1024xbf16, #tpu.memory_space<vmem>>, vector<512x1024xbf16>
    %c0_9 = arith.constant 0 : index
    %c0_10 = arith.constant 0 : index
    %15 = vector.load %arg5[%c0_9, %c0_10] : memref<1x1024xf32, #tpu.memory_space<vmem>>, vector<1x1024xf32>
    %cst_11 = arith.constant dense<0.000000e+00> : vector<8x1024xf32>
    %16 = tpu.matmul %13, %14, %cst_11 {dimension_numbers = #tpu.dot_dimension_numbers<[1], [0], [0], [1], [0, 0, 1, 1], [], []>} : vector<8x512xbf16>, vector<512x1024xbf16>, vector<8x1024xf32> -> vector<8x1024xf32>
    %17 = vector.broadcast %15 : vector<1x1024xf32> to vector<8x1024xf32>
    %18 = arith.addf %16, %17 : vector<8x1024xf32>
    %cst_12 = arith.constant 0.000000e+00 : f32
    %19 = vector.broadcast %cst_12 : f32 to vector<8x1024xf32>
    %20 = arith.maximumf %18, %19 : vector<8x1024xf32>
    %21 = arith.truncf %20 : vector<8x1024xf32> to vector<8x1024xbf16>
    %c0_13 = arith.constant 0 : index
    %c0_14 = arith.constant 0 : index
    %22 = vector.load %arg6[%c0_13, %c0_14] : memref<1024x13xbf16, #tpu.memory_space<vmem>>, vector<1024x13xbf16>
    %c0_15 = arith.constant 0 : index
    %c0_16 = arith.constant 0 : index
    %23 = vector.load %arg7[%c0_15, %c0_16] : memref<1x13xf32, #tpu.memory_space<vmem>>, vector<1x13xf32>
    %cst_17 = arith.constant dense<0.000000e+00> : vector<8x13xf32>
    %24 = tpu.matmul %21, %22, %cst_17 {dimension_numbers = #tpu.dot_dimension_numbers<[1], [0], [0], [1], [0, 0, 1, 1], [], []>} : vector<8x1024xbf16>, vector<1024x13xbf16>, vector<8x13xf32> -> vector<8x13xf32>
    %25 = vector.broadcast %23 : vector<1x13xf32> to vector<8x13xf32>
    %26 = arith.addf %24, %25 : vector<8x13xf32>
    %27 = vector.extract_strided_slice %26 {offsets = [0, 0], sizes = [8, 12], strides = [1, 1]} : vector<8x13xf32> to vector<8x12xf32>
    %28 = vector.extract_strided_slice %26 {offsets = [0, 12], sizes = [8, 1], strides = [1, 1]} : vector<8x13xf32> to vector<8x1xf32>
    %cst_18 = arith.constant dense<0xFF800000> : vector<8xf32>
    %29 = vector.multi_reduction <maximumf>, %27, %cst_18 [1] : vector<8x12xf32> to vector<8xf32>
    %30 = vector.shape_cast %29 : vector<8xf32> to vector<8x1xf32>
    %31 = tpu.iota {dimensions = array<i32: 1>} : vector<8x12xi32>
    %32 = vector.broadcast %30 : vector<8x1xf32> to vector<8x12xf32>
    %33 = arith.cmpf oeq, %27, %32 : vector<8x12xf32>
    %c12_i32 = arith.constant 12 : i32
    %34 = vector.broadcast %c12_i32 : i32 to vector<8x12xi32>
    %35 = arith.select %33, %31, %34 : vector<8x12xi1>, vector<8x12xi32>
    %cst_19 = arith.constant dense<2147483647> : vector<8xi32>
    %36 = vector.multi_reduction <minsi>, %35, %cst_19 [1] : vector<8x12xi32> to vector<8xi32>
    %37 = vector.shape_cast %36 : vector<8xi32> to vector<8x1xi32>
    %c3_i32 = arith.constant 3 : i32
    %38 = vector.broadcast %c3_i32 : i32 to vector<8x1xi32>
    %39 = arith.addi %37, %38 : vector<8x1xi32>
    %40 = arith.sitofp %39 : vector<8x1xi32> to vector<8x1xf32>
    %cst_20 = arith.constant 0.000000e+00 : f32
    %cst_21 = arith.constant 1.000000e+00 : f32
    %41 = vector.broadcast %cst_20 : f32 to vector<8x1xf32>
    %42 = arith.maximumf %41, %28 : vector<8x1xf32>
    %43 = vector.broadcast %cst_21 : f32 to vector<8x1xf32>
    %44 = arith.minimumf %43, %42 : vector<8x1xf32>
    %cst_22 = arith.constant 2.560000e+02 : f32
    %45 = vector.broadcast %cst_22 : f32 to vector<8x1xf32>
    %46 = arith.mulf %44, %45 : vector<8x1xf32>
    %47 = tpu.iota {dimensions = array<i32: 1>} : vector<8x128xi32>
    %c0_i32 = arith.constant 0 : i32
    %48 = vector.broadcast %c0_i32 : i32 to vector<8x128xi32>
    %49 = arith.cmpi eq, %47, %48 : vector<8x128xi32>
    %50 = vector.shape_cast %40 : vector<8x1xf32> to vector<8x1xf32>
    %51 = vector.broadcast %50 : vector<8x1xf32> to vector<8x128xf32>
    %52 = vector.shape_cast %46 : vector<8x1xf32> to vector<8x1xf32>
    %53 = vector.broadcast %52 : vector<8x1xf32> to vector<8x128xf32>
    %54 = arith.select %49, %51, %53 : vector<8x128xi1>, vector<8x128xf32>
    %c0_23 = arith.constant 0 : index
    %c0_24 = arith.constant 0 : index
    %55 = vector.load %arg8[%c0_23, %c0_24] : memref<8x128xf32, #tpu.memory_space<vmem>>, vector<8x128xf32>
    tpu.vector_store %arg8[%c0_23, %c0_24], %54 {strides = array<i32>} : memref<8x128xf32, #tpu.memory_space<vmem>>, vector<8x128xf32>,
    return
  }
  func.func @transform_0(%arg0: i32) -> (i32, i32) {
    %c0_i32 = arith.constant 0 : i32
    %c0_i32_0 = arith.constant 0 : i32
    return %arg0, %c0_i32 : i32, i32
  }
  func.func @transform_1(%arg0: i32) -> (i32, i32) {
    %c0_i32 = arith.constant 0 : i32
    %c0_i32_0 = arith.constant 0 : i32
    %c0_i32_1 = arith.constant 0 : i32
    return %c0_i32, %c0_i32_0 : i32, i32
  }
  func.func @transform_2(%arg0: i32) -> (i32, i32) {
    %c0_i32 = arith.constant 0 : i32
    %c0_i32_0 = arith.constant 0 : i32
    %c0_i32_1 = arith.constant 0 : i32
    return %c0_i32, %c0_i32_0 : i32, i32
  }
  func.func @transform_3(%arg0: i32) -> (i32, i32) {
    %c0_i32 = arith.constant 0 : i32
    %c0_i32_0 = arith.constant 0 : i32
    %c0_i32_1 = arith.constant 0 : i32
    return %c0_i32, %c0_i32_0 : i32, i32
  }
  func.func @transform_4(%arg0: i32) -> (i32, i32) {
    %c0_i32 = arith.constant 0 : i32
    %c0_i32_0 = arith.constant 0 : i32
    %c0_i32_1 = arith.constant 0 : i32
    return %c0_i32, %c0_i32_0 : i32, i32
  }
  func.func @transform_5(%arg0: i32) -> (i32, i32) {
    %c0_i32 = arith.constant 0 : i32
    %c0_i32_0 = arith.constant 0 : i32
    %c0_i32_1 = arith.constant 0 : i32
    return %c0_i32, %c0_i32_0 : i32, i32
  }
  func.func @transform_6(%arg0: i32) -> (i32, i32) {
    %c0_i32 = arith.constant 0 : i32
    %c0_i32_0 = arith.constant 0 : i32
    %c0_i32_1 = arith.constant 0 : i32
    return %c0_i32, %c0_i32_0 : i32, i32
  }
  func.func @transform_7(%arg0: i32) -> (i32, i32) {
    %c0_i32 = arith.constant 0 : i32
    %c0_i32_0 = arith.constant 0 : i32
    return %arg0, %c0_i32 : i32, i32
  }
}

</mosaic_0001>

<llo_original>
// kernel: tpu_custom_call.1
$region0: #{tpu_custom_call.1}
  #allocation0 [shape = 'u32[]', space=smem, size = 0x4, offset = 0x4, fixed_abs, tag = 'smem constant byte address 0x4 - core index']
  #allocation1 [shape = 'u32[144,128]{1,0:T(1,128)}', space=vmem, size = 0x12000, scoped, tag = 'internal scratch']
  %s0 = inlined_call_operand.vmem [shape: bf16[8,256], index: 0, kind: input, shape index: {}]
  %s1 = inlined_call_operand.vmem [shape: bf16[256,512], index: 1, kind: input, shape index: {}]
  %s2 = inlined_call_operand.vmem [shape: f32[1,512], index: 2, kind: input, shape index: {}]
  %s3 = inlined_call_operand.hbm [shape: bf16[512,1024], index: 3, kind: input, shape index: {}]
  %s4 = inlined_call_operand.vmem [shape: f32[1,1024], index: 4, kind: input, shape index: {}]
  %s5 = inlined_call_operand.vmem [shape: bf16[1024,13], index: 5, kind: input, shape index: {}]
  %s6 = inlined_call_operand.vmem [shape: f32[1,13], index: 6, kind: input, shape index: {}]
  %s7 = inlined_call_operand.hbm [shape: f32[8,128], index: 7, kind: output, shape index: {}]
  %s8 = sld [smem:[#allocation0]]
  $region42: #{tpu_custom_call.1} parent=0
    _
  %s10 = ssub.s32 1, %s8
  %s11 = scalar_select 0, %s10, %s8
  $region1: #{tpu_custom_call.1} parent=0
    #allocation2 [shape = 'u8[1048576]{0}', space=vmem, size = 0x100000, scoped, tag = 'input window, operand 3, single buffered']
    #allocation3 [shape = 's32[1]{0}', space=sflag, size = 0x4, scoped, tag = 'scoped memory for tpu_custom_call.1']
    #allocation4 [shape = 's32[1]{0}', space=sflag, size = 0x4, scoped, tag = 'scoped memory for tpu_custom_call.1']
    #allocation5 [shape = 'u8[4096]{0}', space=vmem, size = 0x1000, scoped, tag = 'output window, operand 0, single buffered']
    %12 = vsyncpa [#allocation3], 0
    %13 = vsyncpa [#allocation4], 0
    // Predicated region
    $region2: #{tpu_custom_call.1} parent=1 // pred_check
      _
    $region3: #{tpu_custom_call.1} parent=1 // pred_check_branch
      %15 = sbr.rel (0) target = $region5
    $region4: #{tpu_custom_call.1} parent=1 // pred_region
      _
    $region5: #{tpu_custom_call.1} parent=1 // pred_fallthru
      _
    // Predicated region
    $region6: #{tpu_custom_call.1} parent=1 // pred_check
      _
    $region7: #{tpu_custom_call.1} parent=1 // pred_check_branch
      %17 = sbr.rel (0) target = $region9
    $region8: #{tpu_custom_call.1} parent=1 // pred_region
      _
    $region9: #{tpu_custom_call.1} parent=1 // pred_fallthru
      _
    // Predicated region
    $region10: #{tpu_custom_call.1} parent=1 // pred_check
      _
    $region11: #{tpu_custom_call.1} parent=1 // pred_check_branch
      %19 = sbr.rel (0) target = $region13
    $region12: #{tpu_custom_call.1} parent=1 // pred_region
      _
    $region13: #{tpu_custom_call.1} parent=1 // pred_fallthru
      _
    // Predicated region
    $region14: #{tpu_custom_call.1} parent=1 // pred_check
      _
    $region15: #{tpu_custom_call.1} parent=1 // pred_check_branch
      %21 = sbr.rel (0) target = $region17
    $region16: #{tpu_custom_call.1} parent=1 // pred_region
      %s23 = ssub.s32 32768, 32768
      %24 = vsyncadd [#allocation3], %s23
      %s25 = sshll.u32 [#allocation2], 4
      %s26 = int_to_ptr.vmem [resolvable:$true] %s25
      %31 = dma.hbm_to_vmem [thread:$0]  %s3, 32768, %s26, [#allocation3], 512, 512, 32
    $region17: #{tpu_custom_call.1} parent=1 // pred_fallthru
      _
    // Predicated region
    $region18: #{tpu_custom_call.1} parent=1 // pred_check
      _
    $region19: #{tpu_custom_call.1} parent=1 // pred_check_branch
      %33 = sbr.rel (0) target = $region21
    $region20: #{tpu_custom_call.1} parent=1 // pred_region
      _
    $region21: #{tpu_custom_call.1} parent=1 // pred_fallthru
      _
    // Predicated region
    $region22: #{tpu_custom_call.1} parent=1 // pred_check
      _
    $region23: #{tpu_custom_call.1} parent=1 // pred_check_branch
      %35 = sbr.rel (0) target = $region25
    $region24: #{tpu_custom_call.1} parent=1 // pred_region
      _
    $region25: #{tpu_custom_call.1} parent=1 // pred_fallthru
      _
    // Predicated region
    $region26: #{tpu_custom_call.1} parent=1 // pred_check
      _
    $region27: #{tpu_custom_call.1} parent=1 // pred_check_branch
      %37 = sbr.rel (0) target = $region29
    $region28: #{tpu_custom_call.1} parent=1 // pred_region
      _
    $region29: #{tpu_custom_call.1} parent=1 // pred_fallthru
      _
    // Predicated region
    $region30: #{tpu_custom_call.1} parent=1 // pred_check
      _
    $region31: #{tpu_custom_call.1} parent=1 // pred_check_branch
      %39 = sbr.rel (0) target = $region33
    $region32: #{tpu_custom_call.1} parent=1 // pred_region
      %40 = dma.done [#allocation3], 32768
    $region33: #{tpu_custom_call.1} parent=1 // pred_fallthru
      _
    %v45 = vld [vmem:[%s0] sm:$0xff]
    %vm46 = vcmp.eq.bf16.partialorder %v45, 1132413823
    %v47 = vsel %vm46, 65537, 0
    %v48 = vunpack.c.l.b16 %v47
    %v49 = vunpack.c.h.b16 %v47
    %vm50 = vcmp.ne.s32.totalorder %v48, 0
    %vm51 = vcmp.ne.s32.totalorder %v49, 0
    %v52 = vsel %vm50, 1, 0
    %v53 = vsel %vm51, 1, 0
    %v54 = vcvt.s32.f32 %v52
    %v55 = vcvt.s32.f32 %v53
    %v56 = vpack.c.bf16 %v54, %v54
    %v57 = vpack.c.bf16 %v55, %v55
    %v58 = vld [vmem:[%s1] sm:$0xff]
    %v59 = vld [vmem:[%s1 + $0x8] sm:$0xff]
    %v60 = vld [vmem:[%s1 + $0x10] sm:$0xff]
    %v61 = vld [vmem:[%s1 + $0x18] sm:$0xff]
    %v62 = vld [vmem:[%s1 + $0x20] sm:$0xff]
    %v63 = vld [vmem:[%s1 + $0x28] sm:$0xff]
    %v64 = vld [vmem:[%s1 + $0x30] sm:$0xff]
    %v65 = vld [vmem:[%s1 + $0x38] sm:$0xff]
    %v66 = vld [vmem:[%s1 + $0x40] sm:$0xff]
    %v67 = vld [vmem:[%s1 + $0x48] sm:$0xff]
    %v68 = vld [vmem:[%s1 + $0x50] sm:$0xff]
    %v69 = vld [vmem:[%s1 + $0x58] sm:$0xff]
    %v70 = vld [vmem:[%s1 + $0x60] sm:$0xff]
    %v71 = vld [vmem:[%s1 + $0x68] sm:$0xff]
    %v72 = vld [vmem:[%s1 + $0x70] sm:$0xff]
    %v73 = vld [vmem:[%s1 + $0x78] sm:$0xff]
    %v74 = vld [vmem:[%s1 + $0x80] sm:$0xff]
    %v75 = vld [vmem:[%s1 + $0x88] sm:$0xff]
    %v76 = vld [vmem:[%s1 + $0x90] sm:$0xff]
    %v77 = vld [vmem:[%s1 + $0x98] sm:$0xff]
    %v78 = vld [vmem:[%s1 + $0xa0] sm:$0xff]
    %v79 = vld [vmem:[%s1 + $0xa8] sm:$0xff]
    %v80 = vld [vmem:[%s1 + $0xb0] sm:$0xff]
    %v81 = vld [vmem:[%s1 + $0xb8] sm:$0xff]
    %v82 = vld [vmem:[%s1 + $0xc0] sm:$0xff]
    %v83 = vld [vmem:[%s1 + $0xc8] sm:$0xff]
    %v84 = vld [vmem:[%s1 + $0xd0] sm:$0xff]
    %v85 = vld [vmem:[%s1 + $0xd8] sm:$0xff]
    %v86 = vld [vmem:[%s1 + $0xe0] sm:$0xff]
    %v87 = vld [vmem:[%s1 + $0xe8] sm:$0xff]
    %v88 = vld [vmem:[%s1 + $0xf0] sm:$0xff]
    %v89 = vld [vmem:[%s1 + $0xf8] sm:$0xff]
    %v90 = vld [vmem:[%s1 + $0x100] sm:$0xff]
    %v91 = vld [vmem:[%s1 + $0x108] sm:$0xff]
    %v92 = vld [vmem:[%s1 + $0x110] sm:$0xff]
    %v93 = vld [vmem:[%s1 + $0x118] sm:$0xff]
    %v94 = vld [vmem:[%s1 + $0x120] sm:$0xff]
    %v95 = vld [vmem:[%s1 + $0x128] sm:$0xff]
    %v96 = vld [vmem:[%s1 + $0x130] sm:$0xff]
    %v97 = vld [vmem:[%s1 + $0x138] sm:$0xff]
    %v98 = vld [vmem:[%s1 + $0x140] sm:$0xff]
    %v99 = vld [vmem:[%s1 + $0x148] sm:$0xff]
    %v100 = vld [vmem:[%s1 + $0x150] sm:$0xff]
    %v101 = vld [vmem:[%s1 + $0x158] sm:$0xff]
    %v102 = vld [vmem:[%s1 + $0x160] sm:$0xff]
    %v103 = vld [vmem:[%s1 + $0x168] sm:$0xff]
    %v104 = vld [vmem:[%s1 + $0x170] sm:$0xff]
    %v105 = vld [vmem:[%s1 + $0x178] sm:$0xff]
    %v106 = vld [vmem:[%s1 + $0x180] sm:$0xff]
    %v107 = vld [vmem:[%s1 + $0x188] sm:$0xff]
    %v108 = vld [vmem:[%s1 + $0x190] sm:$0xff]
    %v109 = vld [vmem:[%s1 + $0x198] sm:$0xff]
    %v110 = vld [vmem:[%s1 + $0x1a0] sm:$0xff]
    %v111 = vld [vmem:[%s1 + $0x1a8] sm:$0xff]
    %v112 = vld [vmem:[%s1 + $0x1b0] sm:$0xff]
    %v113 = vld [vmem:[%s1 + $0x1b8] sm:$0xff]
    %v114 = vld [vmem:[%s1 + $0x1c0] sm:$0xff]
    %v115 = vld [vmem:[%s1 + $0x1c8] sm:$0xff]
    %v116 = vld [vmem:[%s1 + $0x1d0] sm:$0xff]
    %v117 = vld [vmem:[%s1 + $0x1d8] sm:$0xff]
    %v118 = vld [vmem:[%s1 + $0x1e0] sm:$0xff]
    %v119 = vld [vmem:[%s1 + $0x1e8] sm:$0xff]
    %v120 = vld [vmem:[%s1 + $0x1f0] sm:$0xff]
    %v121 = vld [vmem:[%s1 + $0x1f8] sm:$0xff]
    %v122 = vld [vmem:[%s2] sm:$0xf]
    %v124 = vlaneseq
    %v125 = vshrl.u32 %v124, 7
    %v126 = vsub.s32 0, %v125
    %v127 = vrot.slane %v122, %v126
    %v128 = vlaneseq
    %v129 = vshrl.u32 %v128, 7
    %v130 = vsub.s32 1, %v129
    %v131 = vrot.slane %v122, %v130
    %v132 = vlaneseq
    %v133 = vshrl.u32 %v132, 7
    %v134 = vsub.s32 2, %v133
    %v135 = vrot.slane %v122, %v134
    %v136 = vlaneseq
    %v137 = vshrl.u32 %v136, 7
    %v138 = vsub.s32 3, %v137
    %v139 = vrot.slane %v122, %v138
    %v208 = vunpack.c.l.b16 %v58
    %v209 = vunpack.c.h.b16 %v58
    %v210 = vunpack.c.l.b16 %v59
    %v211 = vunpack.c.h.b16 %v59
    %v212 = vunpack.c.l.b16 %v60
    %v213 = vunpack.c.h.b16 %v60
    %v214 = vunpack.c.l.b16 %v61
    %v215 = vunpack.c.h.b16 %v61
    %v216 = vunpack.c.l.b16 %v62
    %v217 = vunpack.c.h.b16 %v62
    %v218 = vunpack.c.l.b16 %v63
    %v219 = vunpack.c.h.b16 %v63
    %v220 = vunpack.c.l.b16 %v64
    %v221 = vunpack.c.h.b16 %v64
    %v222 = vunpack.c.l.b16 %v65
    %v223 = vunpack.c.h.b16 %v65
    %v224 = vunpack.c.l.b16 %v66
    %v225 = vunpack.c.h.b16 %v66
    %v226 = vunpack.c.l.b16 %v67
    %v227 = vunpack.c.h.b16 %v67
    %v228 = vunpack.c.l.b16 %v68
    %v229 = vunpack.c.h.b16 %v68
    %v230 = vunpack.c.l.b16 %v69
    %v231 = vunpack.c.h.b16 %v69
    %v232 = vunpack.c.l.b16 %v70
    %v233 = vunpack.c.h.b16 %v70
    %v234 = vunpack.c.l.b16 %v71
    %v235 = vunpack.c.h.b16 %v71
    %v236 = vunpack.c.l.b16 %v72
    %v237 = vunpack.c.h.b16 %v72
    %v238 = vunpack.c.l.b16 %v73
    %v239 = vunpack.c.h.b16 %v73
    %v240 = vunpack.c.l.b16 %v74
    %v241 = vunpack.c.h.b16 %v74
    %v242 = vunpack.c.l.b16 %v75
    %v243 = vunpack.c.h.b16 %v75
    %v244 = vunpack.c.l.b16 %v76
    %v245 = vunpack.c.h.b16 %v76
    %v246 = vunpack.c.l.b16 %v77
    %v247 = vunpack.c.h.b16 %v77
    %v248 = vunpack.c.l.b16 %v78
    %v249 = vunpack.c.h.b16 %v78
    %v250 = vunpack.c.l.b16 %v79
    %v251 = vunpack.c.h.b16 %v79
    %v252 = vunpack.c.l.b16 %v80
    %v253 = vunpack.c.h.b16 %v80
    %v254 = vunpack.c.l.b16 %v81
    %v255 = vunpack.c.h.b16 %v81
    %v256 = vunpack.c.l.b16 %v82
    %v257 = vunpack.c.h.b16 %v82
    %v258 = vunpack.c.l.b16 %v83
    %v259 = vunpack.c.h.b16 %v83
    %v260 = vunpack.c.l.b16 %v84
    %v261 = vunpack.c.h.b16 %v84
    %v262 = vunpack.c.l.b16 %v85
    %v263 = vunpack.c.h.b16 %v85
    %v264 = vunpack.c.l.b16 %v86
    %v265 = vunpack.c.h.b16 %v86
    %v266 = vunpack.c.l.b16 %v87
    %v267 = vunpack.c.h.b16 %v87
    %v268 = vunpack.c.l.b16 %v88
    %v269 = vunpack.c.h.b16 %v88
    %v270 = vunpack.c.l.b16 %v89
    %v271 = vunpack.c.h.b16 %v89
    %v272 = vunpack.c.l.b16 %v90
    %v273 = vunpack.c.h.b16 %v90
    %v274 = vunpack.c.l.b16 %v91
    %v275 = vunpack.c.h.b16 %v91
    %v276 = vunpack.c.l.b16 %v92
    %v277 = vunpack.c.h.b16 %v92
    %v278 = vunpack.c.l.b16 %v93
    %v279 = vunpack.c.h.b16 %v93
    %v280 = vunpack.c.l.b16 %v94
    %v281 = vunpack.c.h.b16 %v94
    %v282 = vunpack.c.l.b16 %v95
    %v283 = vunpack.c.h.b16 %v95
    %v284 = vunpack.c.l.b16 %v96
    %v285 = vunpack.c.h.b16 %v96
    %v286 = vunpack.c.l.b16 %v97
    %v287 = vunpack.c.h.b16 %v97
    %v288 = vunpack.c.l.b16 %v98
    %v289 = vunpack.c.h.b16 %v98
    %v290 = vunpack.c.l.b16 %v99
    %v291 = vunpack.c.h.b16 %v99
    %v292 = vunpack.c.l.b16 %v100
    %v293 = vunpack.c.h.b16 %v100
    %v294 = vunpack.c.l.b16 %v101
    %v295 = vunpack.c.h.b16 %v101
    %v296 = vunpack.c.l.b16 %v102
    %v297 = vunpack.c.h.b16 %v102
    %v298 = vunpack.c.l.b16 %v103
    %v299 = vunpack.c.h.b16 %v103
    %v300 = vunpack.c.l.b16 %v104
    %v301 = vunpack.c.h.b16 %v104
    %v302 = vunpack.c.l.b16 %v105
    %v303 = vunpack.c.h.b16 %v105
    %v304 = vunpack.c.l.b16 %v106
    %v305 = vunpack.c.h.b16 %v106
    %v306 = vunpack.c.l.b16 %v107
    %v307 = vunpack.c.h.b16 %v107
    %v308 = vunpack.c.l.b16 %v108
    %v309 = vunpack.c.h.b16 %v108
    %v310 = vunpack.c.l.b16 %v109
    %v311 = vunpack.c.h.b16 %v109
    %v312 = vunpack.c.l.b16 %v110
    %v313 = vunpack.c.h.b16 %v110
    %v314 = vunpack.c.l.b16 %v111
    %v315 = vunpack.c.h.b16 %v111
    %v316 = vunpack.c.l.b16 %v112
    %v317 = vunpack.c.h.b16 %v112
    %v318 = vunpack.c.l.b16 %v113
    %v319 = vunpack.c.h.b16 %v113
    %v320 = vunpack.c.l.b16 %v114
    %v321 = vunpack.c.h.b16 %v114
    %v322 = vunpack.c.l.b16 %v115
    %v323 = vunpack.c.h.b16 %v115
    %v324 = vunpack.c.l.b16 %v116
    %v325 = vunpack.c.h.b16 %v116
    %v326 = vunpack.c.l.b16 %v117
    %v327 = vunpack.c.h.b16 %v117
    %v328 = vunpack.c.l.b16 %v118
    %v329 = vunpack.c.h.b16 %v118
    %v330 = vunpack.c.l.b16 %v119
    %v331 = vunpack.c.h.b16 %v119
    %v332 = vunpack.c.l.b16 %v120
    %v333 = vunpack.c.h.b16 %v120
    %v334 = vunpack.c.l.b16 %v121
    %v335 = vunpack.c.h.b16 %v121
    %v336 = vpack.c.b16 %v212, %v208
    %v337 = vpack.c.b16 %v213, %v209
    %v338 = vpack.c.b16 %v214, %v210
    %v339 = vpack.c.b16 %v215, %v211
    %v340 = vpack.c.b16 %v220, %v216
    %v341 = vpack.c.b16 %v221, %v217
    %v342 = vpack.c.b16 %v222, %v218
    %v343 = vpack.c.b16 %v223, %v219
    %v344 = vpack.c.b16 %v228, %v224
    %v345 = vpack.c.b16 %v229, %v225
    %v346 = vpack.c.b16 %v230, %v226
    %v347 = vpack.c.b16 %v231, %v227
    %v348 = vpack.c.b16 %v236, %v232
    %v349 = vpack.c.b16 %v237, %v233
    %v350 = vpack.c.b16 %v238, %v234
    %v351 = vpack.c.b16 %v239, %v235
    %v352 = vpack.c.b16 %v244, %v240
    %v353 = vpack.c.b16 %v245, %v241
    %v354 = vpack.c.b16 %v246, %v242
    %v355 = vpack.c.b16 %v247, %v243
    %v356 = vpack.c.b16 %v252, %v248
    %v357 = vpack.c.b16 %v253, %v249
    %v358 = vpack.c.b16 %v254, %v250
    %v359 = vpack.c.b16 %v255, %v251
    %v360 = vpack.c.b16 %v260, %v256
    %v361 = vpack.c.b16 %v261, %v257
    %v362 = vpack.c.b16 %v262, %v258
    %v363 = vpack.c.b16 %v263, %v259
    %v364 = vpack.c.b16 %v268, %v264
    %v365 = vpack.c.b16 %v269, %v265
    %v366 = vpack.c.b16 %v270, %v266
    %v367 = vpack.c.b16 %v271, %v267
    %v368 = vpack.c.b16 %v276, %v272
    %v369 = vpack.c.b16 %v277, %v273
    %v370 = vpack.c.b16 %v278, %v274
    %v371 = vpack.c.b16 %v279, %v275
    %v372 = vpack.c.b16 %v284, %v280
    %v373 = vpack.c.b16 %v285, %v281
    %v374 = vpack.c.b16 %v286, %v282
    %v375 = vpack.c.b16 %v287, %v283
    %v376 = vpack.c.b16 %v292, %v288
    %v377 = vpack.c.b16 %v293, %v289
    %v378 = vpack.c.b16 %v294, %v290
    %v379 = vpack.c.b16 %v295, %v291
    %v380 = vpack.c.b16 %v300, %v296
    %v381 = vpack.c.b16 %v301, %v297
    %v382 = vpack.c.b16 %v302, %v298
    %v383 = vpack.c.b16 %v303, %v299
    %v384 = vpack.c.b16 %v308, %v304
    %v385 = vpack.c.b16 %v309, %v305
    %v386 = vpack.c.b16 %v310, %v306
    %v387 = vpack.c.b16 %v311, %v307
    %v388 = vpack.c.b16 %v316, %v312
    %v389 = vpack.c.b16 %v317, %v313
    %v390 = vpack.c.b16 %v318, %v314
    %v391 = vpack.c.b16 %v319, %v315
    %v392 = vpack.c.b16 %v324, %v320
    %v393 = vpack.c.b16 %v325, %v321
    %v394 = vpack.c.b16 %v326, %v322
    %v395 = vpack.c.b16 %v327, %v323
    %v396 = vpack.c.b16 %v332, %v328
    %v397 = vpack.c.b16 %v333, %v329
    %v398 = vpack.c.b16 %v334, %v330
    %v399 = vpack.c.b16 %v335, %v331
    %464 = vmatprep.subr.bf16.mxu0 %v337
    %465 = vmatpush1.bf16.msra.mxu0 %v336
    %466 = vmatprep.subr.bf16.mxu0 %v341
    %467 = vmatpush1.bf16.msra.mxu0 %v340
    %468 = vmatprep.subr.bf16.mxu0 %v345
    %469 = vmatpush1.bf16.msra.mxu0 %v344
    %470 = vmatprep.subr.bf16.mxu0 %v349
    %471 = vmatpush1.bf16.msra.mxu0 %v348
    %472 = vmatprep.subr.bf16.mxu0 %v353
    %473 = vmatpush1.bf16.msra.mxu0 %v352
    %474 = vmatprep.subr.bf16.mxu0 %v357
    %475 = vmatpush1.bf16.msra.mxu0 %v356
    %476 = vmatprep.subr.bf16.mxu0 %v361
    %477 = vmatpush1.bf16.msra.mxu0 %v360
    %478 = vmatprep.subr.bf16.mxu0 %v365
    %479 = vmatpush1.bf16.msra.mxu0 %v364
    %480 = vmatprep.subr.bf16.mxu0 %v369
    %481 = vmatpush1.bf16.msra.mxu0 %v368
    %482 = vmatprep.subr.bf16.mxu0 %v373
    %483 = vmatpush1.bf16.msra.mxu0 %v372
    %484 = vmatprep.subr.bf16.mxu0 %v377
    %485 = vmatpush1.bf16.msra.mxu0 %v376
    %486 = vmatprep.subr.bf16.mxu0 %v381
    %487 = vmatpush1.bf16.msra.mxu0 %v380
    %488 = vmatprep.subr.bf16.mxu0 %v385
    %489 = vmatpush1.bf16.msra.mxu0 %v384
    %490 = vmatprep.subr.bf16.mxu0 %v389
    %491 = vmatpush1.bf16.msra.mxu0 %v388
    %492 = vmatprep.subr.bf16.mxu0 %v393
    %493 = vmatpush1.bf16.msra.mxu0 %v392
    %494 = vmatprep.subr.bf16.mxu0 %v397
    %495 = vmatpush1.bf16.msra.mxu0 %v396
    %496 = vmatprep.mubr.bf16.mxu0 %v57
    %497 = vmatmul.mubr.bf16.gmra.mrb[0].mxu0 %v56
    %v498 = vpop.f32.mrb[0].mxu0
    %v499 = vadd.f32 %v127, %v498
    %v500 = vpop.f32.mrb[0].mxu0
    %v501 = vadd.f32 %v131, %v500
    %v502 = vpop.f32.mrb[0].mxu0
    %v503 = vpop.f32.mrb[0].mxu0
    %504 = vdwg.mxu0
    %505 = vmatprep.subr.bf16.mxu0 %v339
    %506 = vmatpush1.bf16.msra.mxu0 %v338
    %507 = vmatprep.subr.bf16.mxu0 %v343
    %508 = vmatpush1.bf16.msra.mxu0 %v342
    %509 = vmatprep.subr.bf16.mxu0 %v347
    %510 = vmatpush1.bf16.msra.mxu0 %v346
    %511 = vmatprep.subr.bf16.mxu0 %v351
    %512 = vmatpush1.bf16.msra.mxu0 %v350
    %513 = vmatprep.subr.bf16.mxu0 %v355
    %514 = vmatpush1.bf16.msra.mxu0 %v354
    %515 = vmatprep.subr.bf16.mxu0 %v359
    %516 = vmatpush1.bf16.msra.mxu0 %v358
    %517 = vmatprep.subr.bf16.mxu0 %v363
    %518 = vmatpush1.bf16.msra.mxu0 %v362
    %519 = vmatprep.subr.bf16.mxu0 %v367
    %520 = vmatpush1.bf16.msra.mxu0 %v366
    %521 = vmatprep.subr.bf16.mxu0 %v371
    %522 = vmatpush1.bf16.msra.mxu0 %v370
    %523 = vmatprep.subr.bf16.mxu0 %v375
    %524 = vmatpush1.bf16.msra.mxu0 %v374
    %525 = vmatprep.subr.bf16.mxu0 %v379
    %526 = vmatpush1.bf16.msra.mxu0 %v378
    %527 = vmatprep.subr.bf16.mxu0 %v383
    %528 = vmatpush1.bf16.msra.mxu0 %v382
    %529 = vmatprep.subr.bf16.mxu0 %v387
    %530 = vmatpush1.bf16.msra.mxu0 %v386
    %531 = vmatprep.subr.bf16.mxu0 %v391
    %532 = vmatpush1.bf16.msra.mxu0 %v390
    %533 = vmatprep.subr.bf16.mxu0 %v395
    %534 = vmatpush1.bf16.msra.mxu0 %v394
    %535 = vmatprep.subr.bf16.mxu0 %v399
    %536 = vmatpush1.bf16.msra.mxu0 %v398
    %537 = vmatprep.mubr.bf16.mxu0 %v57
    %538 = vmatmul.mubr.bf16.gmra.mrb[0].mxu0 %v56
    %v539 = vpop.f32.mrb[0].mxu0
    %v540 = vadd.f32 %v135, %v539
    %v541 = vpop.f32.mrb[0].mxu0
    %v542 = vadd.f32 %v139, %v541
    %v543 = vpop.f32.mrb[0].mxu0
    %v544 = vpop.f32.mrb[0].mxu0
    %545 = vdwg.mxu0
    %v546 = vmax.f32 %v499, 0.0
    %v547 = vmax.f32 %v501, 0.0
    %v548 = vmax.f32 %v540, 0.0
    %v549 = vmax.f32 %v542, 0.0
    %v550 = vpack.c.bf16 %v546, %v546
    %v551 = vpack.c.bf16 %v547, %v547
    %v552 = vpack.c.bf16 %v548, %v548
    %v553 = vpack.c.bf16 %v549, %v549
    %v554 = vld [vmem:[#allocation2] sm:$0xff]
    %v555 = vld [vmem:[#allocation2 + $0x8] sm:$0xff]
    %v556 = vld [vmem:[#allocation2 + $0x10] sm:$0xff]
    %v557 = vld [vmem:[#allocation2 + $0x18] sm:$0xff]
    %v558 = vld [vmem:[#allocation2 + $0x20] sm:$0xff]
    %v559 = vld [vmem:[#allocation2 + $0x28] sm:$0xff]
    %v560 = vld [vmem:[#allocation2 + $0x30] sm:$0xff]
    %v561 = vld [vmem:[#allocation2 + $0x38] sm:$0xff]
    %v562 = vld [vmem:[#allocation2 + $0x40] sm:$0xff]
    %v563 = vld [vmem:[#allocation2 + $0x48] sm:$0xff]
    %v564 = vld [vmem:[#allocation2 + $0x50] sm:$0xff]
    %v565 = vld [vmem:[#allocation2 + $0x58] sm:$0xff]
    %v566 = vld [vmem:[#allocation2 + $0x60] sm:$0xff]
    %v567 = vld [vmem:[#allocation2 + $0x68] sm:$0xff]
    %v568 = vld [vmem:[#allocation2 + $0x70] sm:$0xff]
    %v569 = vld [vmem:[#allocation2 + $0x78] sm:$0xff]
    %v570 = vld [vmem:[#allocation2 + $0x80] sm:$0xff]
    %v571 = vld [vmem:[#allocation2 + $0x88] sm:$0xff]
    %v572 = vld [vmem:[#allocation2 + $0x90] sm:$0xff]
    %v573 = vld [vmem:[#allocation2 + $0x98] sm:$0xff]
    %v574 = vld [vmem:[#allocation2 + $0xa0] sm:$0xff]
    %v575 = vld [vmem:[#allocation2 + $0xa8] sm:$0xff]
    %v576 = vld [vmem:[#allocation2 + $0xb0] sm:$0xff]
    %v577 = vld [vmem:[#allocation2 + $0xb8] sm:$0xff]
    %v578 = vld [vmem:[#allocation2 + $0xc0] sm:$0xff]
    %v579 = vld [vmem:[#allocation2 + $0xc8] sm:$0xff]
    %v580 = vld [vmem:[#allocation2 + $0xd0] sm:$0xff]
    %v581 = vld [vmem:[#allocation2 + $0xd8] sm:$0xff]
    %v582 = vld [vmem:[#allocation2 + $0xe0] sm:$0xff]
    %v583 = vld [vmem:[#allocation2 + $0xe8] sm:$0xff]
    %v584 = vld [vmem:[#allocation2 + $0xf0] sm:$0xff]
    %v585 = vld [vmem:[#allocation2 + $0xf8] sm:$0xff]
    %v586 = vld [vmem:[#allocation2 + $0x100] sm:$0xff]
    %v587 = vld [vmem:[#allocation2 + $0x108] sm:$0xff]
    %v588 = vld [vmem:[#allocation2 + $0x110] sm:$0xff]
    %v589 = vld [vmem:[#allocation2 + $0x118] sm:$0xff]
    %v590 = vld [vmem:[#allocation2 + $0x120] sm:$0xff]
    %v591 = vld [vmem:[#allocation2 + $0x128] sm:$0xff]
    %v592 = vld [vmem:[#allocation2 + $0x130] sm:$0xff]
    %v593 = vld [vmem:[#allocation2 + $0x138] sm:$0xff]
    %v594 = vld [vmem:[#allocation2 + $0x140] sm:$0xff]
    %v595 = vld [vmem:[#allocation2 + $0x148] sm:$0xff]
    %v596 = vld [vmem:[#allocation2 + $0x150] sm:$0xff]
    %v597 = vld [vmem:[#allocation2 + $0x158] sm:$0xff]
    %v598 = vld [vmem:[#allocation2 + $0x160] sm:$0xff]
    %v599 = vld [vmem:[#allocation2 + $0x168] sm:$0xff]
    %v600 = vld [vmem:[#allocation2 + $0x170] sm:$0xff]
    %v601 = vld [vmem:[#allocation2 + $0x178] sm:$0xff]
    %v602 = vld [vmem:[#allocation2 + $0x180] sm:$0xff]
    %v603 = vld [vmem:[#allocation2 + $0x188] sm:$0xff]
    %v604 = vld [vmem:[#allocation2 + $0x190] sm:$0xff]
    %v605 = vld [vmem:[#allocation2 + $0x198] sm:$0xff]
    %v606 = vld [vmem:[#allocation2 + $0x1a0] sm:$0xff]
    %v607 = vld [vmem:[#allocation2 + $0x1a8] sm:$0xff]
    %v608 = vld [vmem:[#allocation2 + $0x1b0] sm:$0xff]
    %v609 = vld [vmem:[#allocation2 + $0x1b8] sm:$0xff]
    %v610 = vld [vmem:[#allocation2 + $0x1c0] sm:$0xff]
    %v611 = vld [vmem:[#allocation2 + $0x1c8] sm:$0xff]
    %v612 = vld [vmem:[#allocation2 + $0x1d0] sm:$0xff]
    %v613 = vld [vmem:[#allocation2 + $0x1d8] sm:$0xff]
    %v614 = vld [vmem:[#allocation2 + $0x1e0] sm:$0xff]
    %v615 = vld [vmem:[#allocation2 + $0x1e8] sm:$0xff]
    %v616 = vld [vmem:[#allocation2 + $0x1f0] sm:$0xff]
    %v617 = vld [vmem:[#allocation2 + $0x1f8] sm:$0xff]
    %v618 = vld [vmem:[#allocation2 + $0x200] sm:$0xff]
    %v619 = vld [vmem:[#allocation2 + $0x208] sm:$0xff]
    %v620 = vld [vmem:[#allocation2 + $0x210] sm:$0xff]
    %v621 = vld [vmem:[#allocation2 + $0x218] sm:$0xff]
    %v622 = vld [vmem:[#allocation2 + $0x220] sm:$0xff]
    %v623 = vld [vmem:[#allocation2 + $0x228] sm:$0xff]
    %v624 = vld [vmem:[#allocation2 + $0x230] sm:$0xff]
    %v625 = vld [vmem:[#allocation2 + $0x238] sm:$0xff]
    %v626 = vld [vmem:[#allocation2 + $0x240] sm:$0xff]
    %v627 = vld [vmem:[#allocation2 + $0x248] sm:$0xff]
    %v628 = vld [vmem:[#allocation2 + $0x250] sm:$0xff]
    %v629 = vld [vmem:[#allocation2 + $0x258] sm:$0xff]
    %v630 = vld [vmem:[#allocation2 + $0x260] sm:$0xff]
    %v631 = vld [vmem:[#allocation2 + $0x268] sm:$0xff]
    %v632 = vld [vmem:[#allocation2 + $0x270] sm:$0xff]
    %v633 = vld [vmem:[#allocation2 + $0x278] sm:$0xff]
    %v634 = vld [vmem:[#allocation2 + $0x280] sm:$0xff]
    %v635 = vld [vmem:[#allocation2 + $0x288] sm:$0xff]
    %v636 = vld [vmem:[#allocation2 + $0x290] sm:$0xff]
    %v637 = vld [vmem:[#allocation2 + $0x298] sm:$0xff]
    %v638 = vld [vmem:[#allocation2 + $0x2a0] sm:$0xff]
    %v639 = vld [vmem:[#allocation2 + $0x2a8] sm:$0xff]
    %v640 = vld [vmem:[#allocation2 + $0x2b0] sm:$0xff]
    %v641 = vld [vmem:[#allocation2 + $0x2b8] sm:$0xff]
    %v642 = vld [vmem:[#allocation2 + $0x2c0] sm:$0xff]
    %v643 = vld [vmem:[#allocation2 + $0x2c8] sm:$0xff]
    %v644 = vld [vmem:[#allocation2 + $0x2d0] sm:$0xff]
    %v645 = vld [vmem:[#allocation2 + $0x2d8] sm:$0xff]
    %v646 = vld [vmem:[#allocation2 + $0x2e0] sm:$0xff]
    %v647 = vld [vmem:[#allocation2 + $0x2e8] sm:$0xff]
    %v648 = vld [vmem:[#allocation2 + $0x2f0] sm:$0xff]
    %v649 = vld [vmem:[#allocation2 + $0x2f8] sm:$0xff]
    %v650 = vld [vmem:[#allocation2 + $0x300] sm:$0xff]
    %v651 = vld [vmem:[#allocation2 + $0x308] sm:$0xff]
    %v652 = vld [vmem:[#allocation2 + $0x310] sm:$0xff]
    %v653 = vld [vmem:[#allocation2 + $0x318] sm:$0xff]
    %v654 = vld [vmem:[#allocation2 + $0x320] sm:$0xff]
    %v655 = vld [vmem:[#allocation2 + $0x328] sm:$0xff]
    %v656 = vld [vmem:[#allocation2 + $0x330] sm:$0xff]
    %v657 = vld [vmem:[#allocation2 + $0x338] sm:$0xff]
    %v658 = vld [vmem:[#allocation2 + $0x340] sm:$0xff]
    %v659 = vld [vmem:[#allocation2 + $0x348] sm:$0xff]
    %v660 = vld [vmem:[#allocation2 + $0x350] sm:$0xff]
    %v661 = vld [vmem:[#allocation2 + $0x358] sm:$0xff]
    %v662 = vld [vmem:[#allocation2 + $0x360] sm:$0xff]
    %v663 = vld [vmem:[#allocation2 + $0x368] sm:$0xff]
    %v664 = vld [vmem:[#allocation2 + $0x370] sm:$0xff]
    %v665 = vld [vmem:[#allocation2 + $0x378] sm:$0xff]
    %v666 = vld [vmem:[#allocation2 + $0x380] sm:$0xff]
    %v667 = vld [vmem:[#allocation2 + $0x388] sm:$0xff]
    %v668 = vld [vmem:[#allocation2 + $0x390] sm:$0xff]
    %v669 = vld [vmem:[#allocation2 + $0x398] sm:$0xff]
    %v670 = vld [vmem:[#allocation2 + $0x3a0] sm:$0xff]
    %v671 = vld [vmem:[#allocation2 + $0x3a8] sm:$0xff]
    %v672 = vld [vmem:[#allocation2 + $0x3b0] sm:$0xff]
    %v673 = vld [vmem:[#allocation2 + $0x3b8] sm:$0xff]
    %v674 = vld [vmem:[#allocation2 + $0x3c0] sm:$0xff]
    %v675 = vld [vmem:[#allocation2 + $0x3c8] sm:$0xff]
    %v676 = vld [vmem:[#allocation2 + $0x3d0] sm:$0xff]
    %v677 = vld [vmem:[#allocation2 + $0x3d8] sm:$0xff]
    %v678 = vld [vmem:[#allocation2 + $0x3e0] sm:$0xff]
    %v679 = vld [vmem:[#allocation2 + $0x3e8] sm:$0xff]
    %v680 = vld [vmem:[#allocation2 + $0x3f0] sm:$0xff]
    %v681 = vld [vmem:[#allocation2 + $0x3f8] sm:$0xff]
    %v682 = vld [vmem:[#allocation2 + $0x400] sm:$0xff]
    %v683 = vld [vmem:[#allocation2 + $0x408] sm:$0xff]
    %v684 = vld [vmem:[#allocation2 + $0x410] sm:$0xff]
    %v685 = vld [vmem:[#allocation2 + $0x418] sm:$0xff]
    %v686 = vld [vmem:[#allocation2 + $0x420] sm:$0xff]
    %v687 = vld [vmem:[#allocation2 + $0x428] sm:$0xff]
    %v688 = vld [vmem:[#allocation2 + $0x430] sm:$0xff]
    %v689 = vld [vmem:[#allocation2 + $0x438] sm:$0xff]
    %v690 = vld [vmem:[#allocation2 + $0x440] sm:$0xff]
    %v691 = vld [vmem:[#allocation2 + $0x448] sm:$0xff]
    %v692 = vld [vmem:[#allocation2 + $0x450] sm:$0xff]
    %v693 = vld [vmem:[#allocation2 + $0x458] sm:$0xff]
    %v694 = vld [vmem:[#allocation2 + $0x460] sm:$0xff]
    %v695 = vld [vmem:[#allocation2 + $0x468] sm:$0xff]
    %v696 = vld [vmem:[#allocation2 + $0x470] sm:$0xff]
    %v697 = vld [vmem:[#allocation2 + $0x478] sm:$0xff]
    %v698 = vld [vmem:[#allocation2 + $0x480] sm:$0xff]
    %v699 = vld [vmem:[#allocation2 + $0x488] sm:$0xff]
    %v700 = vld [vmem:[#allocation2 + $0x490] sm:$0xff]
    %v701 = vld [vmem:[#allocation2 + $0x498] sm:$0xff]
    %v702 = vld [vmem:[#allocation2 + $0x4a0] sm:$0xff]
    %v703 = vld [vmem:[#allocation2 + $0x4a8] sm:$0xff]
    %v704 = vld [vmem:[#allocation2 + $0x4b0] sm:$0xff]
    %v705 = vld [vmem:[#allocation2 + $0x4b8] sm:$0xff]
    %v706 = vld [vmem:[#allocation2 + $0x4c0] sm:$0xff]
    %v707 = vld [vmem:[#allocation2 + $0x4c8] sm:$0xff]
    %v708 = vld [vmem:[#allocation2 + $0x4d0] sm:$0xff]
    %v709 = vld [vmem:[#allocation2 + $0x4d8] sm:$0xff]
    %v710 = vld [vmem:[#allocation2 + $0x4e0] sm:$0xff]
    %v711 = vld [vmem:[#allocation2 + $0x4e8] sm:$0xff]
    %v712 = vld [vmem:[#allocation2 + $0x4f0] sm:$0xff]
    %v713 = vld [vmem:[#allocation2 + $0x4f8] sm:$0xff]
    %v714 = vld [vmem:[#allocation2 + $0x500] sm:$0xff]
    %v715 = vld [vmem:[#allocation2 + $0x508] sm:$0xff]
    %v716 = vld [vmem:[#allocation2 + $0x510] sm:$0xff]
    %v717 = vld [vmem:[#allocation2 + $0x518] sm:$0xff]
    %v718 = vld [vmem:[#allocation2 + $0x520] sm:$0xff]
    %v719 = vld [vmem:[#allocation2 + $0x528] sm:$0xff]
    %v720 = vld [vmem:[#allocation2 + $0x530] sm:$0xff]
    %v721 = vld [vmem:[#allocation2 + $0x538] sm:$0xff]
    %v722 = vld [vmem:[#allocation2 + $0x540] sm:$0xff]
    %v723 = vld [vmem:[#allocation2 + $0x548] sm:$0xff]
    %v724 = vld [vmem:[#allocation2 + $0x550] sm:$0xff]
    %v725 = vld [vmem:[#allocation2 + $0x558] sm:$0xff]
    %v726 = vld [vmem:[#allocation2 + $0x560] sm:$0xff]
    %v727 = vld [vmem:[#allocation2 + $0x568] sm:$0xff]
    %v728 = vld [vmem:[#allocation2 + $0x570] sm:$0xff]
    %v729 = vld [vmem:[#allocation2 + $0x578] sm:$0xff]
    %v730 = vld [vmem:[#allocation2 + $0x580] sm:$0xff]
    %v731 = vld [vmem:[#allocation2 + $0x588] sm:$0xff]
    %v732 = vld [vmem:[#allocation2 + $0x590] sm:$0xff]
    %v733 = vld [vmem:[#allocation2 + $0x598] sm:$0xff]
    %v734 = vld [vmem:[#allocation2 + $0x5a0] sm:$0xff]
    %v735 = vld [vmem:[#allocation2 + $0x5a8] sm:$0xff]
    %v736 = vld [vmem:[#allocation2 + $0x5b0] sm:$0xff]
    %v737 = vld [vmem:[#allocation2 + $0x5b8] sm:$0xff]
    %v738 = vld [vmem:[#allocation2 + $0x5c0] sm:$0xff]
    %v739 = vld [vmem:[#allocation2 + $0x5c8] sm:$0xff]
    %v740 = vld [vmem:[#allocation2 + $0x5d0] sm:$0xff]
    %v741 = vld [vmem:[#allocation2 + $0x5d8] sm:$0xff]
    %v742 = vld [vmem:[#allocation2 + $0x5e0] sm:$0xff]
    %v743 = vld [vmem:[#allocation2 + $0x5e8] sm:$0xff]
    %v744 = vld [vmem:[#allocation2 + $0x5f0] sm:$0xff]
    %v745 = vld [vmem:[#allocation2 + $0x5f8] sm:$0xff]
    %v746 = vld [vmem:[#allocation2 + $0x600] sm:$0xff]
    %v747 = vld [vmem:[#allocation2 + $0x608] sm:$0xff]
    %v748 = vld [vmem:[#allocation2 + $0x610] sm:$0xff]
    %v749 = vld [vmem:[#allocation2 + $0x618] sm:$0xff]
    %v750 = vld [vmem:[#allocation2 + $0x620] sm:$0xff]
    %v751 = vld [vmem:[#allocation2 + $0x628] sm:$0xff]
    %v752 = vld [vmem:[#allocation2 + $0x630] sm:$0xff]
    %v753 = vld [vmem:[#allocation2 + $0x638] sm:$0xff]
    %v754 = vld [vmem:[#allocation2 + $0x640] sm:$0xff]
    %v755 = vld [vmem:[#allocation2 + $0x648] sm:$0xff]
    %v756 = vld [vmem:[#allocation2 + $0x650] sm:$0xff]
    %v757 = vld [vmem:[#allocation2 + $0x658] sm:$0xff]
    %v758 = vld [vmem:[#allocation2 + $0x660] sm:$0xff]
    %v759 = vld [vmem:[#allocation2 + $0x668] sm:$0xff]
    %v760 = vld [vmem:[#allocation2 + $0x670] sm:$0xff]
    %v761 = vld [vmem:[#allocation2 + $0x678] sm:$0xff]
    %v762 = vld [vmem:[#allocation2 + $0x680] sm:$0xff]
    %v763 = vld [vmem:[#allocation2 + $0x688] sm:$0xff]
    %v764 = vld [vmem:[#allocation2 + $0x690] sm:$0xff]
    %v765 = vld [vmem:[#allocation2 + $0x698] sm:$0xff]
    %v766 = vld [vmem:[#allocation2 + $0x6a0] sm:$0xff]
    %v767 = vld [vmem:[#allocation2 + $0x6a8] sm:$0xff]
    %v768 = vld [vmem:[#allocation2 + $0x6b0] sm:$0xff]
    %v769 = vld [vmem:[#allocation2 + $0x6b8] sm:$0xff]
    %v770 = vld [vmem:[#allocation2 + $0x6c0] sm:$0xff]
    %v771 = vld [vmem:[#allocation2 + $0x6c8] sm:$0xff]
    %v772 = vld [vmem:[#allocation2 + $0x6d0] sm:$0xff]
    %v773 = vld [vmem:[#allocation2 + $0x6d8] sm:$0xff]
    %v774 = vld [vmem:[#allocation2 + $0x6e0] sm:$0xff]
    %v775 = vld [vmem:[#allocation2 + $0x6e8] sm:$0xff]
    %v776 = vld [vmem:[#allocation2 + $0x6f0] sm:$0xff]
    %v777 = vld [vmem:[#allocation2 + $0x6f8] sm:$0xff]
    %v778 = vld [vmem:[#allocation2 + $0x700] sm:$0xff]
    %v779 = vld [vmem:[#allocation2 + $0x708] sm:$0xff]
    %v780 = vld [vmem:[#allocation2 + $0x710] sm:$0xff]
    %v781 = vld [vmem:[#allocation2 + $0x718] sm:$0xff]
    %v782 = vld [vmem:[#allocation2 + $0x720] sm:$0xff]
    %v783 = vld [vmem:[#allocation2 + $0x728] sm:$0xff]
    %v784 = vld [vmem:[#allocation2 + $0x730] sm:$0xff]
    %v785 = vld [vmem:[#allocation2 + $0x738] sm:$0xff]
    %v786 = vld [vmem:[#allocation2 + $0x740] sm:$0xff]
    %v787 = vld [vmem:[#allocation2 + $0x748] sm:$0xff]
    %v788 = vld [vmem:[#allocation2 + $0x750] sm:$0xff]
    %v789 = vld [vmem:[#allocation2 + $0x758] sm:$0xff]
    %v790 = vld [vmem:[#allocation2 + $0x760] sm:$0xff]
    %v791 = vld [vmem:[#allocation2 + $0x768] sm:$0xff]
    %v792 = vld [vmem:[#allocation2 + $0x770] sm:$0xff]
    %v793 = vld [vmem:[#allocation2 + $0x778] sm:$0xff]
    %v794 = vld [vmem:[#allocation2 + $0x780] sm:$0xff]
    %v795 = vld [vmem:[#allocation2 + $0x788] sm:$0xff]
    %v796 = vld [vmem:[#allocation2 + $0x790] sm:$0xff]
    %v797 = vld [vmem:[#allocation2 + $0x798] sm:$0xff]
    %v798 = vld [vmem:[#allocation2 + $0x7a0] sm:$0xff]
    %v799 = vld [vmem:[#allocation2 + $0x7a8] sm:$0xff]
    %v800 = vld [vmem:[#allocation2 + $0x7b0] sm:$0xff]
    %v801 = vld [vmem:[#allocation2 + $0x7b8] sm:$0xff]
    %v802 = vld [vmem:[#allocation2 + $0x7c0] sm:$0xff]
    %v803 = vld [vmem:[#allocation2 + $0x7c8] sm:$0xff]
    %v804 = vld [vmem:[#allocation2 + $0x7d0] sm:$0xff]
    %v805 = vld [vmem:[#allocation2 + $0x7d8] sm:$0xff]
    %v806 = vld [vmem:[#allocation2 + $0x7e0] sm:$0xff]
    %v807 = vld [vmem:[#allocation2 + $0x7e8] sm:$0xff]
    %v808 = vld [vmem:[#allocation2 + $0x7f0] sm:$0xff]
    %v809 = vld [vmem:[#allocation2 + $0x7f8] sm:$0xff]
    %v810 = vld [vmem:[%s4] sm:$0xff]
    %v812 = vlaneseq
    %v813 = vshrl.u32 %v812, 7
    %v814 = vsub.s32 0, %v813
    %v815 = vrot.slane %v810, %v814
    %v816 = vlaneseq
    %v817 = vshrl.u32 %v816, 7
    %v818 = vsub.s32 1, %v817
    %v819 = vrot.slane %v810, %v818
    %v820 = vlaneseq
    %v821 = vshrl.u32 %v820, 7
    %v822 = vsub.s32 2, %v821
    %v823 = vrot.slane %v810, %v822
    %v824 = vlaneseq
    %v825 = vshrl.u32 %v824, 7
    %v826 = vsub.s32 3, %v825
    %v827 = vrot.slane %v810, %v826
    %v828 = vlaneseq
    %v829 = vshrl.u32 %v828, 7
    %v830 = vsub.s32 4, %v829
    %v831 = vrot.slane %v810, %v830
    %v832 = vlaneseq
    %v833 = vshrl.u32 %v832, 7
    %v834 = vsub.s32 5, %v833
    %v835 = vrot.slane %v810, %v834
    %v836 = vlaneseq
    %v837 = vshrl.u32 %v836, 7
    %v838 = vsub.s32 6, %v837
    %v839 = vrot.slane %v810, %v838
    %v840 = vlaneseq
    %v841 = vshrl.u32 %v840, 7
    %v842 = vsub.s32 7, %v841
    %v843 = vrot.slane %v810, %v842
    %v1108 = vunpack.c.l.b16 %v554
    %v1109 = vunpack.c.h.b16 %v554
    %v1110 = vunpack.c.l.b16 %v555
    %v1111 = vunpack.c.h.b16 %v555
    %v1112 = vunpack.c.l.b16 %v556
    %v1113 = vunpack.c.h.b16 %v556
    %v1114 = vunpack.c.l.b16 %v557
    %v1115 = vunpack.c.h.b16 %v557
    %v1116 = vunpack.c.l.b16 %v558
    %v1117 = vunpack.c.h.b16 %v558
    %v1118 = vunpack.c.l.b16 %v559
    %v1119 = vunpack.c.h.b16 %v559
    %v1120 = vunpack.c.l.b16 %v560
    %v1121 = vunpack.c.h.b16 %v560
    %v1122 = vunpack.c.l.b16 %v561
    %v1123 = vunpack.c.h.b16 %v561
    %v1124 = vunpack.c.l.b16 %v562
    %v1125 = vunpack.c.h.b16 %v562
    %v1126 = vunpack.c.l.b16 %v563
    %v1127 = vunpack.c.h.b16 %v563
    %v1128 = vunpack.c.l.b16 %v564
    %v1129 = vunpack.c.h.b16 %v564
    %v1130 = vunpack.c.l.b16 %v565
    %v1131 = vunpack.c.h.b16 %v565
    %v1132 = vunpack.c.l.b16 %v566
    %v1133 = vunpack.c.h.b16 %v566
    %v1134 = vunpack.c.l.b16 %v567
    %v1135 = vunpack.c.h.b16 %v567
    %v1136 = vunpack.c.l.b16 %v568
    %v1137 = vunpack.c.h.b16 %v568
    %v1138 = vunpack.c.l.b16 %v569
    %v1139 = vunpack.c.h.b16 %v569
    %v1140 = vunpack.c.l.b16 %v570
    %v1141 = vunpack.c.h.b16 %v570
    %v1142 = vunpack.c.l.b16 %v571
    %v1143 = vunpack.c.h.b16 %v571
    %v1144 = vunpack.c.l.b16 %v572
    %v1145 = vunpack.c.h.b16 %v572
    %v1146 = vunpack.c.l.b16 %v573
    %v1147 = vunpack.c.h.b16 %v573
    %v1148 = vunpack.c.l.b16 %v574
    %v1149 = vunpack.c.h.b16 %v574
    %v1150 = vunpack.c.l.b16 %v575
    %v1151 = vunpack.c.h.b16 %v575
    %v1152 = vunpack.c.l.b16 %v576
    %v1153 = vunpack.c.h.b16 %v576
    %v1154 = vunpack.c.l.b16 %v577
    %v1155 = vunpack.c.h.b16 %v577
    %v1156 = vunpack.c.l.b16 %v578
    %v1157 = vunpack.c.h.b16 %v578
    %v1158 = vunpack.c.l.b16 %v579
    %v1159 = vunpack.c.h.b16 %v579
    %v1160 = vunpack.c.l.b16 %v580
    %v1161 = vunpack.c.h.b16 %v580
    %v1162 = vunpack.c.l.b16 %v581
    %v1163 = vunpack.c.h.b16 %v581
    %v1164 = vunpack.c.l.b16 %v582
    %v1165 = vunpack.c.h.b16 %v582
    %v1166 = vunpack.c.l.b16 %v583
    %v1167 = vunpack.c.h.b16 %v583
    %v1168 = vunpack.c.l.b16 %v584
    %v1169 = vunpack.c.h.b16 %v584
    %v1170 = vunpack.c.l.b16 %v585
    %v1171 = vunpack.c.h.b16 %v585
    %v1172 = vunpack.c.l.b16 %v586
    %v1173 = vunpack.c.h.b16 %v586
    %v1174 = vunpack.c.l.b16 %v587
    %v1175 = vunpack.c.h.b16 %v587
    %v1176 = vunpack.c.l.b16 %v588
    %v1177 = vunpack.c.h.b16 %v588
    %v1178 = vunpack.c.l.b16 %v589
    %v1179 = vunpack.c.h.b16 %v589
    %v1180 = vunpack.c.l.b16 %v590
    %v1181 = vunpack.c.h.b16 %v590
    %v1182 = vunpack.c.l.b16 %v591
    %v1183 = vunpack.c.h.b16 %v591
    %v1184 = vunpack.c.l.b16 %v592
    %v1185 = vunpack.c.h.b16 %v592
    %v1186 = vunpack.c.l.b16 %v593
    %v1187 = vunpack.c.h.b16 %v593
    %v1188 = vunpack.c.l.b16 %v594
    %v1189 = vunpack.c.h.b16 %v594
    %v1190 = vunpack.c.l.b16 %v595
    %v1191 = vunpack.c.h.b16 %v595
    %v1192 = vunpack.c.l.b16 %v596
    %v1193 = vunpack.c.h.b16 %v596
    %v1194 = vunpack.c.l.b16 %v597
    %v1195 = vunpack.c.h.b16 %v597
    %v1196 = vunpack.c.l.b16 %v598
    %v1197 = vunpack.c.h.b16 %v598
    %v1198 = vunpack.c.l.b16 %v599
    %v1199 = vunpack.c.h.b16 %v599
    %v1200 = vunpack.c.l.b16 %v600
    %v1201 = vunpack.c.h.b16 %v600
    %v1202 = vunpack.c.l.b16 %v601
    %v1203 = vunpack.c.h.b16 %v601
    %v1204 = vunpack.c.l.b16 %v602
    %v1205 = vunpack.c.h.b16 %v602
    %v1206 = vunpack.c.l.b16 %v603
    %v1207 = vunpack.c.h.b16 %v603
    %v1208 = vunpack.c.l.b16 %v604
    %v1209 = vunpack.c.h.b16 %v604
    %v1210 = vunpack.c.l.b16 %v605
    %v1211 = vunpack.c.h.b16 %v605
    %v1212 = vunpack.c.l.b16 %v606
    %v1213 = vunpack.c.h.b16 %v606
    %v1214 = vunpack.c.l.b16 %v607
    %v1215 = vunpack.c.h.b16 %v607
    %v1216 = vunpack.c.l.b16 %v608
    %v1217 = vunpack.c.h.b16 %v608
    %v1218 = vunpack.c.l.b16 %v609
    %v1219 = vunpack.c.h.b16 %v609
    %v1220 = vunpack.c.l.b16 %v610
    %v1221 = vunpack.c.h.b16 %v610
    %v1222 = vunpack.c.l.b16 %v611
    %v1223 = vunpack.c.h.b16 %v611
    %v1224 = vunpack.c.l.b16 %v612
    %v1225 = vunpack.c.h.b16 %v612
    %v1226 = vunpack.c.l.b16 %v613
    %v1227 = vunpack.c.h.b16 %v613
    %v1228 = vunpack.c.l.b16 %v614
    %v1229 = vunpack.c.h.b16 %v614
    %v1230 = vunpack.c.l.b16 %v615
    %v1231 = vunpack.c.h.b16 %v615
    %v1232 = vunpack.c.l.b16 %v616
    %v1233 = vunpack.c.h.b16 %v616
    %v1234 = vunpack.c.l.b16 %v617
    %v1235 = vunpack.c.h.b16 %v617
    %v1236 = vunpack.c.l.b16 %v618
    %v1237 = vunpack.c.h.b16 %v618
    %v1238 = vunpack.c.l.b16 %v619
    %v1239 = vunpack.c.h.b16 %v619
    %v1240 = vunpack.c.l.b16 %v620
    %v1241 = vunpack.c.h.b16 %v620
    %v1242 = vunpack.c.l.b16 %v621
    %v1243 = vunpack.c.h.b16 %v621
    %v1244 = vunpack.c.l.b16 %v622
    %v1245 = vunpack.c.h.b16 %v622
    %v1246 = vunpack.c.l.b16 %v623
    %v1247 = vunpack.c.h.b16 %v623
    %v1248 = vunpack.c.l.b16 %v624
    %v1249 = vunpack.c.h.b16 %v624
    %v1250 = vunpack.c.l.b16 %v625
    %v1251 = vunpack.c.h.b16 %v625
    %v1252 = vunpack.c.l.b16 %v626
    %v1253 = vunpack.c.h.b16 %v626
    %v1254 = vunpack.c.l.b16 %v627
    %v1255 = vunpack.c.h.b16 %v627
    %v1256 = vunpack.c.l.b16 %v628
    %v1257 = vunpack.c.h.b16 %v628
    %v1258 = vunpack.c.l.b16 %v629
    %v1259 = vunpack.c.h.b16 %v629
    %v1260 = vunpack.c.l.b16 %v630
    %v1261 = vunpack.c.h.b16 %v630
    %v1262 = vunpack.c.l.b16 %v631
    %v1263 = vunpack.c.h.b16 %v631
    %v1264 = vunpack.c.l.b16 %v632
    %v1265 = vunpack.c.h.b16 %v632
    %v1266 = vunpack.c.l.b16 %v633
    %v1267 = vunpack.c.h.b16 %v633
    %v1268 = vunpack.c.l.b16 %v634
    %v1269 = vunpack.c.h.b16 %v634
    %v1270 = vunpack.c.l.b16 %v635
    %v1271 = vunpack.c.h.b16 %v635
    %v1272 = vunpack.c.l.b16 %v636
    %v1273 = vunpack.c.h.b16 %v636
    %v1274 = vunpack.c.l.b16 %v637
    %v1275 = vunpack.c.h.b16 %v637
    %v1276 = vunpack.c.l.b16 %v638
    %v1277 = vunpack.c.h.b16 %v638
    %v1278 = vunpack.c.l.b16 %v639
    %v1279 = vunpack.c.h.b16 %v639
    %v1280 = vunpack.c.l.b16 %v640
    %v1281 = vunpack.c.h.b16 %v640
    %v1282 = vunpack.c.l.b16 %v641
    %v1283 = vunpack.c.h.b16 %v641
    %v1284 = vunpack.c.l.b16 %v642
    %v1285 = vunpack.c.h.b16 %v642
    %v1286 = vunpack.c.l.b16 %v643
    %v1287 = vunpack.c.h.b16 %v643
    %v1288 = vunpack.c.l.b16 %v644
    %v1289 = vunpack.c.h.b16 %v644
    %v1290 = vunpack.c.l.b16 %v645
    %v1291 = vunpack.c.h.b16 %v645
    %v1292 = vunpack.c.l.b16 %v646
    %v1293 = vunpack.c.h.b16 %v646
    %v1294 = vunpack.c.l.b16 %v647
    %v1295 = vunpack.c.h.b16 %v647
    %v1296 = vunpack.c.l.b16 %v648
    %v1297 = vunpack.c.h.b16 %v648
    %v1298 = vunpack.c.l.b16 %v649
    %v1299 = vunpack.c.h.b16 %v649
    %v1300 = vunpack.c.l.b16 %v650
    %v1301 = vunpack.c.h.b16 %v650
    %v1302 = vunpack.c.l.b16 %v651
    %v1303 = vunpack.c.h.b16 %v651
    %v1304 = vunpack.c.l.b16 %v652
    %v1305 = vunpack.c.h.b16 %v652
    %v1306 = vunpack.c.l.b16 %v653
    %v1307 = vunpack.c.h.b16 %v653
    %v1308 = vunpack.c.l.b16 %v654
    %v1309 = vunpack.c.h.b16 %v654
    %v1310 = vunpack.c.l.b16 %v655
    %v1311 = vunpack.c.h.b16 %v655
    %v1312 = vunpack.c.l.b16 %v656
    %v1313 = vunpack.c.h.b16 %v656
    %v1314 = vunpack.c.l.b16 %v657
    %v1315 = vunpack.c.h.b16 %v657
    %v1316 = vunpack.c.l.b16 %v658
    %v1317 = vunpack.c.h.b16 %v658
    %v1318 = vunpack.c.l.b16 %v659
    %v1319 = vunpack.c.h.b16 %v659
    %v1320 = vunpack.c.l.b16 %v660
    %v1321 = vunpack.c.h.b16 %v660
    %v1322 = vunpack.c.l.b16 %v661
    %v1323 = vunpack.c.h.b16 %v661
    %v1324 = vunpack.c.l.b16 %v662
    %v1325 = vunpack.c.h.b16 %v662
    %v1326 = vunpack.c.l.b16 %v663
    %v1327 = vunpack.c.h.b16 %v663
    %v1328 = vunpack.c.l.b16 %v664
    %v1329 = vunpack.c.h.b16 %v664
    %v1330 = vunpack.c.l.b16 %v665
    %v1331 = vunpack.c.h.b16 %v665
    %v1332 = vunpack.c.l.b16 %v666
    %v1333 = vunpack.c.h.b16 %v666
    %v1334 = vunpack.c.l.b16 %v667
    %v1335 = vunpack.c.h.b16 %v667
    %v1336 = vunpack.c.l.b16 %v668
    %v1337 = vunpack.c.h.b16 %v668
    %v1338 = vunpack.c.l.b16 %v669
    %v1339 = vunpack.c.h.b16 %v669
    %v1340 = vunpack.c.l.b16 %v670
    %v1341 = vunpack.c.h.b16 %v670
    %v1342 = vunpack.c.l.b16 %v671
    %v1343 = vunpack.c.h.b16 %v671
    %v1344 = vunpack.c.l.b16 %v672
    %v1345 = vunpack.c.h.b16 %v672
    %v1346 = vunpack.c.l.b16 %v673
    %v1347 = vunpack.c.h.b16 %v673
    %v1348 = vunpack.c.l.b16 %v674
    %v1349 = vunpack.c.h.b16 %v674
    %v1350 = vunpack.c.l.b16 %v675
    %v1351 = vunpack.c.h.b16 %v675
    %v1352 = vunpack.c.l.b16 %v676
    %v1353 = vunpack.c.h.b16 %v676
    %v1354 = vunpack.c.l.b16 %v677
    %v1355 = vunpack.c.h.b16 %v677
    %v1356 = vunpack.c.l.b16 %v678
    %v1357 = vunpack.c.h.b16 %v678
    %v1358 = vunpack.c.l.b16 %v679
    %v1359 = vunpack.c.h.b16 %v679
    %v1360 = vunpack.c.l.b16 %v680
    %v1361 = vunpack.c.h.b16 %v680
    %v1362 = vunpack.c.l.b16 %v681
    %v1363 = vunpack.c.h.b16 %v681
    %v1364 = vunpack.c.l.b16 %v682
    %v1365 = vunpack.c.h.b16 %v682
    %v1366 = vunpack.c.l.b16 %v683
    %v1367 = vunpack.c.h.b16 %v683
    %v1368 = vunpack.c.l.b16 %v684
    %v1369 = vunpack.c.h.b16 %v684
    %v1370 = vunpack.c.l.b16 %v685
    %v1371 = vunpack.c.h.b16 %v685
    %v1372 = vunpack.c.l.b16 %v686
    %v1373 = vunpack.c.h.b16 %v686
    %v1374 = vunpack.c.l.b16 %v687
    %v1375 = vunpack.c.h.b16 %v687
    %v1376 = vunpack.c.l.b16 %v688
    %v1377 = vunpack.c.h.b16 %v688
    %v1378 = vunpack.c.l.b16 %v689
    %v1379 = vunpack.c.h.b16 %v689
    %v1380 = vunpack.c.l.b16 %v690
    %v1381 = vunpack.c.h.b16 %v690
    %v1382 = vunpack.c.l.b16 %v691
    %v1383 = vunpack.c.h.b16 %v691
    %v1384 = vunpack.c.l.b16 %v692
    %v1385 = vunpack.c.h.b16 %v692
    %v1386 = vunpack.c.l.b16 %v693
    %v1387 = vunpack.c.h.b16 %v693
    %v1388 = vunpack.c.l.b16 %v694
    %v1389 = vunpack.c.h.b16 %v694
    %v1390 = vunpack.c.l.b16 %v695
    %v1391 = vunpack.c.h.b16 %v695
    %v1392 = vunpack.c.l.b16 %v696
    %v1393 = vunpack.c.h.b16 %v696
    %v1394 = vunpack.c.l.b16 %v697
    %v1395 = vunpack.c.h.b16 %v697
    %v1396 = vunpack.c.l.b16 %v698
    %v1397 = vunpack.c.h.b16 %v698
    %v1398 = vunpack.c.l.b16 %v699
    %v1399 = vunpack.c.h.b16 %v699
    %v1400 = vunpack.c.l.b16 %v700
    %v1401 = vunpack.c.h.b16 %v700
    %v1402 = vunpack.c.l.b16 %v701
    %v1403 = vunpack.c.h.b16 %v701
    %v1404 = vunpack.c.l.b16 %v702
    %v1405 = vunpack.c.h.b16 %v702
    %v1406 = vunpack.c.l.b16 %v703
    %v1407 = vunpack.c.h.b16 %v703
    %v1408 = vunpack.c.l.b16 %v704
    %v1409 = vunpack.c.h.b16 %v704
    %v1410 = vunpack.c.l.b16 %v705
    %v1411 = vunpack.c.h.b16 %v705
    %v1412 = vunpack.c.l.b16 %v706
    %v1413 = vunpack.c.h.b16 %v706
    %v1414 = vunpack.c.l.b16 %v707
    %v1415 = vunpack.c.h.b16 %v707
    %v1416 = vunpack.c.l.b16 %v708
    %v1417 = vunpack.c.h.b16 %v708
    %v1418 = vunpack.c.l.b16 %v709
    %v1419 = vunpack.c.h.b16 %v709
    %v1420 = vunpack.c.l.b16 %v710
    %v1421 = vunpack.c.h.b16 %v710
    %v1422 = vunpack.c.l.b16 %v711
    %v1423 = vunpack.c.h.b16 %v711
    %v1424 = vunpack.c.l.b16 %v712
    %v1425 = vunpack.c.h.b16 %v712
    %v1426 = vunpack.c.l.b16 %v713
    %v1427 = vunpack.c.h.b16 %v713
    %v1428 = vunpack.c.l.b16 %v714
    %v1429 = vunpack.c.h.b16 %v714
    %v1430 = vunpack.c.l.b16 %v715
    %v1431 = vunpack.c.h.b16 %v715
    %v1432 = vunpack.c.l.b16 %v716
    %v1433 = vunpack.c.h.b16 %v716
    %v1434 = vunpack.c.l.b16 %v717
    %v1435 = vunpack.c.h.b16 %v717
    %v1436 = vunpack.c.l.b16 %v718
    %v1437 = vunpack.c.h.b16 %v718
    %v1438 = vunpack.c.l.b16 %v719
    %v1439 = vunpack.c.h.b16 %v719
    %v1440 = vunpack.c.l.b16 %v720
    %v1441 = vunpack.c.h.b16 %v720
    %v1442 = vunpack.c.l.b16 %v721
    %v1443 = vunpack.c.h.b16 %v721
    %v1444 = vunpack.c.l.b16 %v722
    %v1445 = vunpack.c.h.b16 %v722
    %v1446 = vunpack.c.l.b16 %v723
    %v1447 = vunpack.c.h.b16 %v723
    %v1448 = vunpack.c.l.b16 %v724
    %v1449 = vunpack.c.h.b16 %v724
    %v1450 = vunpack.c.l.b16 %v725
    %v1451 = vunpack.c.h.b16 %v725
    %v1452 = vunpack.c.l.b16 %v726
    %v1453 = vunpack.c.h.b16 %v726
    %v1454 = vunpack.c.l.b16 %v727
    %v1455 = vunpack.c.h.b16 %v727
    %v1456 = vunpack.c.l.b16 %v728
    %v1457 = vunpack.c.h.b16 %v728
    %v1458 = vunpack.c.l.b16 %v729
    %v1459 = vunpack.c.h.b16 %v729
    %v1460 = vunpack.c.l.b16 %v730
    %v1461 = vunpack.c.h.b16 %v730
    %v1462 = vunpack.c.l.b16 %v731
    %v1463 = vunpack.c.h.b16 %v731
    %v1464 = vunpack.c.l.b16 %v732
    %v1465 = vunpack.c.h.b16 %v732
    %v1466 = vunpack.c.l.b16 %v733
    %v1467 = vunpack.c.h.b16 %v733
    %v1468 = vunpack.c.l.b16 %v734
    %v1469 = vunpack.c.h.b16 %v734
    %v1470 = vunpack.c.l.b16 %v735
    %v1471 = vunpack.c.h.b16 %v735
    %v1472 = vunpack.c.l.b16 %v736
    %v1473 = vunpack.c.h.b16 %v736
    %v1474 = vunpack.c.l.b16 %v737
    %v1475 = vunpack.c.h.b16 %v737
    %v1476 = vunpack.c.l.b16 %v738
    %v1477 = vunpack.c.h.b16 %v738
    %v1478 = vunpack.c.l.b16 %v739
    %v1479 = vunpack.c.h.b16 %v739
    %v1480 = vunpack.c.l.b16 %v740
    %v1481 = vunpack.c.h.b16 %v740
    %v1482 = vunpack.c.l.b16 %v741
    %v1483 = vunpack.c.h.b16 %v741
    %v1484 = vunpack.c.l.b16 %v742
    %v1485 = vunpack.c.h.b16 %v742
    %v1486 = vunpack.c.l.b16 %v743
    %v1487 = vunpack.c.h.b16 %v743
    %v1488 = vunpack.c.l.b16 %v744
    %v1489 = vunpack.c.h.b16 %v744
    %v1490 = vunpack.c.l.b16 %v745
    %v1491 = vunpack.c.h.b16 %v745
    %v1492 = vunpack.c.l.b16 %v746
    %v1493 = vunpack.c.h.b16 %v746
    %v1494 = vunpack.c.l.b16 %v747
    %v1495 = vunpack.c.h.b16 %v747
    %v1496 = vunpack.c.l.b16 %v748
    %v1497 = vunpack.c.h.b16 %v748
    %v1498 = vunpack.c.l.b16 %v749
    %v1499 = vunpack.c.h.b16 %v749
    %v1500 = vunpack.c.l.b16 %v750
    %v1501 = vunpack.c.h.b16 %v750
    %v1502 = vunpack.c.l.b16 %v751
    %v1503 = vunpack.c.h.b16 %v751
    %v1504 = vunpack.c.l.b16 %v752
    %v1505 = vunpack.c.h.b16 %v752
    %v1506 = vunpack.c.l.b16 %v753
    %v1507 = vunpack.c.h.b16 %v753
    %v1508 = vunpack.c.l.b16 %v754
    %v1509 = vunpack.c.h.b16 %v754
    %v1510 = vunpack.c.l.b16 %v755
    %v1511 = vunpack.c.h.b16 %v755
    %v1512 = vunpack.c.l.b16 %v756
    %v1513 = vunpack.c.h.b16 %v756
    %v1514 = vunpack.c.l.b16 %v757
    %v1515 = vunpack.c.h.b16 %v757
    %v1516 = vunpack.c.l.b16 %v758
    %v1517 = vunpack.c.h.b16 %v758
    %v1518 = vunpack.c.l.b16 %v759
    %v1519 = vunpack.c.h.b16 %v759
    %v1520 = vunpack.c.l.b16 %v760
    %v1521 = vunpack.c.h.b16 %v760
    %v1522 = vunpack.c.l.b16 %v761
    %v1523 = vunpack.c.h.b16 %v761
    %v1524 = vunpack.c.l.b16 %v762
    %v1525 = vunpack.c.h.b16 %v762
    %v1526 = vunpack.c.l.b16 %v763
    %v1527 = vunpack.c.h.b16 %v763
    %v1528 = vunpack.c.l.b16 %v764
    %v1529 = vunpack.c.h.b16 %v764
    %v1530 = vunpack.c.l.b16 %v765
    %v1531 = vunpack.c.h.b16 %v765
    %v1532 = vunpack.c.l.b16 %v766
    %v1533 = vunpack.c.h.b16 %v766
    %v1534 = vunpack.c.l.b16 %v767
    %v1535 = vunpack.c.h.b16 %v767
    %v1536 = vunpack.c.l.b16 %v768
    %v1537 = vunpack.c.h.b16 %v768
    %v1538 = vunpack.c.l.b16 %v769
    %v1539 = vunpack.c.h.b16 %v769
    %v1540 = vunpack.c.l.b16 %v770
    %v1541 = vunpack.c.h.b16 %v770
    %v1542 = vunpack.c.l.b16 %v771
    %v1543 = vunpack.c.h.b16 %v771
    %v1544 = vunpack.c.l.b16 %v772
    %v1545 = vunpack.c.h.b16 %v772
    %v1546 = vunpack.c.l.b16 %v773
    %v1547 = vunpack.c.h.b16 %v773
    %v1548 = vunpack.c.l.b16 %v774
    %v1549 = vunpack.c.h.b16 %v774
    %v1550 = vunpack.c.l.b16 %v775
    %v1551 = vunpack.c.h.b16 %v775
    %v1552 = vunpack.c.l.b16 %v776
    %v1553 = vunpack.c.h.b16 %v776
    %v1554 = vunpack.c.l.b16 %v777
    %v1555 = vunpack.c.h.b16 %v777
    %v1556 = vunpack.c.l.b16 %v778
    %v1557 = vunpack.c.h.b16 %v778
    %v1558 = vunpack.c.l.b16 %v779
    %v1559 = vunpack.c.h.b16 %v779
    %v1560 = vunpack.c.l.b16 %v780
    %v1561 = vunpack.c.h.b16 %v780
    %v1562 = vunpack.c.l.b16 %v781
    %v1563 = vunpack.c.h.b16 %v781
    %v1564 = vunpack.c.l.b16 %v782
    %v1565 = vunpack.c.h.b16 %v782
    %v1566 = vunpack.c.l.b16 %v783
    %v1567 = vunpack.c.h.b16 %v783
    %v1568 = vunpack.c.l.b16 %v784
    %v1569 = vunpack.c.h.b16 %v784
    %v1570 = vunpack.c.l.b16 %v785
    %v1571 = vunpack.c.h.b16 %v785
    %v1572 = vunpack.c.l.b16 %v786
    %v1573 = vunpack.c.h.b16 %v786
    %v1574 = vunpack.c.l.b16 %v787
    %v1575 = vunpack.c.h.b16 %v787
    %v1576 = vunpack.c.l.b16 %v788
    %v1577 = vunpack.c.h.b16 %v788
    %v1578 = vunpack.c.l.b16 %v789
    %v1579 = vunpack.c.h.b16 %v789
    %v1580 = vunpack.c.l.b16 %v790
    %v1581 = vunpack.c.h.b16 %v790
    %v1582 = vunpack.c.l.b16 %v791
    %v1583 = vunpack.c.h.b16 %v791
    %v1584 = vunpack.c.l.b16 %v792
    %v1585 = vunpack.c.h.b16 %v792
    %v1586 = vunpack.c.l.b16 %v793
    %v1587 = vunpack.c.h.b16 %v793
    %v1588 = vunpack.c.l.b16 %v794
    %v1589 = vunpack.c.h.b16 %v794
    %v1590 = vunpack.c.l.b16 %v795
    %v1591 = vunpack.c.h.b16 %v795
    %v1592 = vunpack.c.l.b16 %v796
    %v1593 = vunpack.c.h.b16 %v796
    %v1594 = vunpack.c.l.b16 %v797
    %v1595 = vunpack.c.h.b16 %v797
    %v1596 = vunpack.c.l.b16 %v798
    %v1597 = vunpack.c.h.b16 %v798
    %v1598 = vunpack.c.l.b16 %v799
    %v1599 = vunpack.c.h.b16 %v799
    %v1600 = vunpack.c.l.b16 %v800
    %v1601 = vunpack.c.h.b16 %v800
    %v1602 = vunpack.c.l.b16 %v801
    %v1603 = vunpack.c.h.b16 %v801
    %v1604 = vunpack.c.l.b16 %v802
    %v1605 = vunpack.c.h.b16 %v802
    %v1606 = vunpack.c.l.b16 %v803
    %v1607 = vunpack.c.h.b16 %v803
    %v1608 = vunpack.c.l.b16 %v804
    %v1609 = vunpack.c.h.b16 %v804
    %v1610 = vunpack.c.l.b16 %v805
    %v1611 = vunpack.c.h.b16 %v805
    %v1612 = vunpack.c.l.b16 %v806
    %v1613 = vunpack.c.h.b16 %v806
    %v1614 = vunpack.c.l.b16 %v807
    %v1615 = vunpack.c.h.b16 %v807
    %v1616 = vunpack.c.l.b16 %v808
    %v1617 = vunpack.c.h.b16 %v808
    %v1618 = vunpack.c.l.b16 %v809
    %v1619 = vunpack.c.h.b16 %v809
    %v1620 = vpack.c.b16 %v1116, %v1108
    %v1621 = vpack.c.b16 %v1117, %v1109
    %v1622 = vpack.c.b16 %v1118, %v1110
    %v1623 = vpack.c.b16 %v1119, %v1111
    %v1624 = vpack.c.b16 %v1120, %v1112
    %v1625 = vpack.c.b16 %v1121, %v1113
    %v1626 = vpack.c.b16 %v1122, %v1114
    %v1627 = vpack.c.b16 %v1123, %v1115
    %v1628 = vpack.c.b16 %v1132, %v1124
    %v1629 = vpack.c.b16 %v1133, %v1125
    %v1630 = vpack.c.b16 %v1134, %v1126
    %v1631 = vpack.c.b16 %v1135, %v1127
    %v1632 = vpack.c.b16 %v1136, %v1128
    %v1633 = vpack.c.b16 %v1137, %v1129
    %v1634 = vpack.c.b16 %v1138, %v1130
    %v1635 = vpack.c.b16 %v1139, %v1131
    %v1636 = vpack.c.b16 %v1148, %v1140
    %v1637 = vpack.c.b16 %v1149, %v1141
    %v1638 = vpack.c.b16 %v1150, %v1142
    %v1639 = vpack.c.b16 %v1151, %v1143
    %v1640 = vpack.c.b16 %v1152, %v1144
    %v1641 = vpack.c.b16 %v1153, %v1145
    %v1642 = vpack.c.b16 %v1154, %v1146
    %v1643 = vpack.c.b16 %v1155, %v1147
    %v1644 = vpack.c.b16 %v1164, %v1156
    %v1645 = vpack.c.b16 %v1165, %v1157
    %v1646 = vpack.c.b16 %v1166, %v1158
    %v1647 = vpack.c.b16 %v1167, %v1159
    %v1648 = vpack.c.b16 %v1168, %v1160
    %v1649 = vpack.c.b16 %v1169, %v1161
    %v1650 = vpack.c.b16 %v1170, %v1162
    %v1651 = vpack.c.b16 %v1171, %v1163
    %v1652 = vpack.c.b16 %v1180, %v1172
    %v1653 = vpack.c.b16 %v1181, %v1173
    %v1654 = vpack.c.b16 %v1182, %v1174
    %v1655 = vpack.c.b16 %v1183, %v1175
    %v1656 = vpack.c.b16 %v1184, %v1176
    %v1657 = vpack.c.b16 %v1185, %v1177
    %v1658 = vpack.c.b16 %v1186, %v1178
    %v1659 = vpack.c.b16 %v1187, %v1179
    %v1660 = vpack.c.b16 %v1196, %v1188
    %v1661 = vpack.c.b16 %v1197, %v1189
    %v1662 = vpack.c.b16 %v1198, %v1190
    %v1663 = vpack.c.b16 %v1199, %v1191
    %v1664 = vpack.c.b16 %v1200, %v1192
    %v1665 = vpack.c.b16 %v1201, %v1193
    %v1666 = vpack.c.b16 %v1202, %v1194
    %v1667 = vpack.c.b16 %v1203, %v1195
    %v1668 = vpack.c.b16 %v1212, %v1204
    %v1669 = vpack.c.b16 %v1213, %v1205
    %v1670 = vpack.c.b16 %v1214, %v1206
    %v1671 = vpack.c.b16 %v1215, %v1207
    %v1672 = vpack.c.b16 %v1216, %v1208
    %v1673 = vpack.c.b16 %v1217, %v1209
    %v1674 = vpack.c.b16 %v1218, %v1210
    %v1675 = vpack.c.b16 %v1219, %v1211
    %v1676 = vpack.c.b16 %v1228, %v1220
    %v1677 = vpack.c.b16 %v1229, %v1221
    %v1678 = vpack.c.b16 %v1230, %v1222
    %v1679 = vpack.c.b16 %v1231, %v1223
    %v1680 = vpack.c.b16 %v1232, %v1224
    %v1681 = vpack.c.b16 %v1233, %v1225
    %v1682 = vpack.c.b16 %v1234, %v1226
    %v1683 = vpack.c.b16 %v1235, %v1227
    %v1684 = vpack.c.b16 %v1244, %v1236
    %v1685 = vpack.c.b16 %v1245, %v1237
    %v1686 = vpack.c.b16 %v1246, %v1238
    %v1687 = vpack.c.b16 %v1247, %v1239
    %v1688 = vpack.c.b16 %v1248, %v1240
    %v1689 = vpack.c.b16 %v1249, %v1241
    %v1690 = vpack.c.b16 %v1250, %v1242
    %v1691 = vpack.c.b16 %v1251, %v1243
    %v1692 = vpack.c.b16 %v1260, %v1252
    %v1693 = vpack.c.b16 %v1261, %v1253
    %v1694 = vpack.c.b16 %v1262, %v1254
    %v1695 = vpack.c.b16 %v1263, %v1255
    %v1696 = vpack.c.b16 %v1264, %v1256
    %v1697 = vpack.c.b16 %v1265, %v1257
    %v1698 = vpack.c.b16 %v1266, %v1258
    %v1699 = vpack.c.b16 %v1267, %v1259
    %v1700 = vpack.c.b16 %v1276, %v1268
    %v1701 = vpack.c.b16 %v1277, %v1269
    %v1702 = vpack.c.b16 %v1278, %v1270
    %v1703 = vpack.c.b16 %v1279, %v1271
    %v1704 = vpack.c.b16 %v1280, %v1272
    %v1705 = vpack.c.b16 %v1281, %v1273
    %v1706 = vpack.c.b16 %v1282, %v1274
    %v1707 = vpack.c.b16 %v1283, %v1275
    %v1708 = vpack.c.b16 %v1292, %v1284
    %v1709 = vpack.c.b16 %v1293, %v1285
    %v1710 = vpack.c.b16 %v1294, %v1286
    %v1711 = vpack.c.b16 %v1295, %v1287
    %v1712 = vpack.c.b16 %v1296, %v1288
    %v1713 = vpack.c.b16 %v1297, %v1289
    %v1714 = vpack.c.b16 %v1298, %v1290
    %v1715 = vpack.c.b16 %v1299, %v1291
    %v1716 = vpack.c.b16 %v1308, %v1300
    %v1717 = vpack.c.b16 %v1309, %v1301
    %v1718 = vpack.c.b16 %v1310, %v1302
    %v1719 = vpack.c.b16 %v1311, %v1303
    %v1720 = vpack.c.b16 %v1312, %v1304
    %v1721 = vpack.c.b16 %v1313, %v1305
    %v1722 = vpack.c.b16 %v1314, %v1306
    %v1723 = vpack.c.b16 %v1315, %v1307
    %v1724 = vpack.c.b16 %v1324, %v1316
    %v1725 = vpack.c.b16 %v1325, %v1317
    %v1726 = vpack.c.b16 %v1326, %v1318
    %v1727 = vpack.c.b16 %v1327, %v1319
    %v1728 = vpack.c.b16 %v1328, %v1320
    %v1729 = vpack.c.b16 %v1329, %v1321
    %v1730 = vpack.c.b16 %v1330, %v1322
    %v1731 = vpack.c.b16 %v1331, %v1323
    %v1732 = vpack.c.b16 %v1340, %v1332
    %v1733 = vpack.c.b16 %v1341, %v1333
    %v1734 = vpack.c.b16 %v1342, %v1334
    %v1735 = vpack.c.b16 %v1343, %v1335
    %v1736 = vpack.c.b16 %v1344, %v1336
    %v1737 = vpack.c.b16 %v1345, %v1337
    %v1738 = vpack.c.b16 %v1346, %v1338
    %v1739 = vpack.c.b16 %v1347, %v1339
    %v1740 = vpack.c.b16 %v1356, %v1348
    %v1741 = vpack.c.b16 %v1357, %v1349
    %v1742 = vpack.c.b16 %v1358, %v1350
    %v1743 = vpack.c.b16 %v1359, %v1351
    %v1744 = vpack.c.b16 %v1360, %v1352
    %v1745 = vpack.c.b16 %v1361, %v1353
    %v1746 = vpack.c.b16 %v1362, %v1354
    %v1747 = vpack.c.b16 %v1363, %v1355
    %v1748 = vpack.c.b16 %v1372, %v1364
    %v1749 = vpack.c.b16 %v1373, %v1365
    %v1750 = vpack.c.b16 %v1374, %v1366
    %v1751 = vpack.c.b16 %v1375, %v1367
    %v1752 = vpack.c.b16 %v1376, %v1368
    %v1753 = vpack.c.b16 %v1377, %v1369
    %v1754 = vpack.c.b16 %v1378, %v1370
    %v1755 = vpack.c.b16 %v1379, %v1371
    %v1756 = vpack.c.b16 %v1388, %v1380
    %v1757 = vpack.c.b16 %v1389, %v1381
    %v1758 = vpack.c.b16 %v1390, %v1382
    %v1759 = vpack.c.b16 %v1391, %v1383
    %v1760 = vpack.c.b16 %v1392, %v1384
    %v1761 = vpack.c.b16 %v1393, %v1385
    %v1762 = vpack.c.b16 %v1394, %v1386
    %v1763 = vpack.c.b16 %v1395, %v1387
    %v1764 = vpack.c.b16 %v1404, %v1396
    %v1765 = vpack.c.b16 %v1405, %v1397
    %v1766 = vpack.c.b16 %v1406, %v1398
    %v1767 = vpack.c.b16 %v1407, %v1399
    %v1768 = vpack.c.b16 %v1408, %v1400
    %v1769 = vpack.c.b16 %v1409, %v1401
    %v1770 = vpack.c.b16 %v1410, %v1402
    %v1771 = vpack.c.b16 %v1411, %v1403
    %v1772 = vpack.c.b16 %v1420, %v1412
    %v1773 = vpack.c.b16 %v1421, %v1413
    %v1774 = vpack.c.b16 %v1422, %v1414
    %v1775 = vpack.c.b16 %v1423, %v1415
    %v1776 = vpack.c.b16 %v1424, %v1416
    %v1777 = vpack.c.b16 %v1425, %v1417
    %v1778 = vpack.c.b16 %v1426, %v1418
    %v1779 = vpack.c.b16 %v1427, %v1419
    %v1780 = vpack.c.b16 %v1436, %v1428
    %v1781 = vpack.c.b16 %v1437, %v1429
    %v1782 = vpack.c.b16 %v1438, %v1430
    %v1783 = vpack.c.b16 %v1439, %v1431
    %v1784 = vpack.c.b16 %v1440, %v1432
    %v1785 = vpack.c.b16 %v1441, %v1433
    %v1786 = vpack.c.b16 %v1442, %v1434
    %v1787 = vpack.c.b16 %v1443, %v1435
    %v1788 = vpack.c.b16 %v1452, %v1444
    %v1789 = vpack.c.b16 %v1453, %v1445
    %v1790 = vpack.c.b16 %v1454, %v1446
    %v1791 = vpack.c.b16 %v1455, %v1447
    %v1792 = vpack.c.b16 %v1456, %v1448
    %v1793 = vpack.c.b16 %v1457, %v1449
    %v1794 = vpack.c.b16 %v1458, %v1450
    %v1795 = vpack.c.b16 %v1459, %v1451
    %v1796 = vpack.c.b16 %v1468, %v1460
    %v1797 = vpack.c.b16 %v1469, %v1461
    %v1798 = vpack.c.b16 %v1470, %v1462
    %v1799 = vpack.c.b16 %v1471, %v1463
    %v1800 = vpack.c.b16 %v1472, %v1464
    %v1801 = vpack.c.b16 %v1473, %v1465
    %v1802 = vpack.c.b16 %v1474, %v1466
    %v1803 = vpack.c.b16 %v1475, %v1467
    %v1804 = vpack.c.b16 %v1484, %v1476
    %v1805 = vpack.c.b16 %v1485, %v1477
    %v1806 = vpack.c.b16 %v1486, %v1478
    %v1807 = vpack.c.b16 %v1487, %v1479
    %v1808 = vpack.c.b16 %v1488, %v1480
    %v1809 = vpack.c.b16 %v1489, %v1481
    %v1810 = vpack.c.b16 %v1490, %v1482
    %v1811 = vpack.c.b16 %v1491, %v1483
    %v1812 = vpack.c.b16 %v1500, %v1492
    %v1813 = vpack.c.b16 %v1501, %v1493
    %v1814 = vpack.c.b16 %v1502, %v1494
    %v1815 = vpack.c.b16 %v1503, %v1495
    %v1816 = vpack.c.b16 %v1504, %v1496
    %v1817 = vpack.c.b16 %v1505, %v1497
    %v1818 = vpack.c.b16 %v1506, %v1498
    %v1819 = vpack.c.b16 %v1507, %v1499
    %v1820 = vpack.c.b16 %v1516, %v1508
    %v1821 = vpack.c.b16 %v1517, %v1509
    %v1822 = vpack.c.b16 %v1518, %v1510
    %v1823 = vpack.c.b16 %v1519, %v1511
    %v1824 = vpack.c.b16 %v1520, %v1512
    %v1825 = vpack.c.b16 %v1521, %v1513
    %v1826 = vpack.c.b16 %v1522, %v1514
    %v1827 = vpack.c.b16 %v1523, %v1515
    %v1828 = vpack.c.b16 %v1532, %v1524
    %v1829 = vpack.c.b16 %v1533, %v1525
    %v1830 = vpack.c.b16 %v1534, %v1526
    %v1831 = vpack.c.b16 %v1535, %v1527
    %v1832 = vpack.c.b16 %v1536, %v1528
    %v1833 = vpack.c.b16 %v1537, %v1529
    %v1834 = vpack.c.b16 %v1538, %v1530
    %v1835 = vpack.c.b16 %v1539, %v1531
    %v1836 = vpack.c.b16 %v1548, %v1540
    %v1837 = vpack.c.b16 %v1549, %v1541
    %v1838 = vpack.c.b16 %v1550, %v1542
    %v1839 = vpack.c.b16 %v1551, %v1543
    %v1840 = vpack.c.b16 %v1552, %v1544
    %v1841 = vpack.c.b16 %v1553, %v1545
    %v1842 = vpack.c.b16 %v1554, %v1546
    %v1843 = vpack.c.b16 %v1555, %v1547
    %v1844 = vpack.c.b16 %v1564, %v1556
    %v1845 = vpack.c.b16 %v1565, %v1557
    %v1846 = vpack.c.b16 %v1566, %v1558
    %v1847 = vpack.c.b16 %v1567, %v1559
    %v1848 = vpack.c.b16 %v1568, %v1560
    %v1849 = vpack.c.b16 %v1569, %v1561
    %v1850 = vpack.c.b16 %v1570, %v1562
    %v1851 = vpack.c.b16 %v1571, %v1563
    %v1852 = vpack.c.b16 %v1580, %v1572
    %v1853 = vpack.c.b16 %v1581, %v1573
    %v1854 = vpack.c.b16 %v1582, %v1574
    %v1855 = vpack.c.b16 %v1583, %v1575
    %v1856 = vpack.c.b16 %v1584, %v1576
    %v1857 = vpack.c.b16 %v1585, %v1577
    %v1858 = vpack.c.b16 %v1586, %v1578
    %v1859 = vpack.c.b16 %v1587, %v1579
    %v1860 = vpack.c.b16 %v1596, %v1588
    %v1861 = vpack.c.b16 %v1597, %v1589
    %v1862 = vpack.c.b16 %v1598, %v1590
    %v1863 = vpack.c.b16 %v1599, %v1591
    %v1864 = vpack.c.b16 %v1600, %v1592
    %v1865 = vpack.c.b16 %v1601, %v1593
    %v1866 = vpack.c.b16 %v1602, %v1594
    %v1867 = vpack.c.b16 %v1603, %v1595
    %v1868 = vpack.c.b16 %v1612, %v1604
    %v1869 = vpack.c.b16 %v1613, %v1605
    %v1870 = vpack.c.b16 %v1614, %v1606
    %v1871 = vpack.c.b16 %v1615, %v1607
    %v1872 = vpack.c.b16 %v1616, %v1608
    %v1873 = vpack.c.b16 %v1617, %v1609
    %v1874 = vpack.c.b16 %v1618, %v1610
    %v1875 = vpack.c.b16 %v1619, %v1611
    %2132 = vmatprep.subr.bf16.mxu0 %v1621
    %2133 = vmatpush1.bf16.msra.mxu0 %v1620
    %2134 = vmatprep.subr.bf16.mxu0 %v1629
    %2135 = vmatpush1.bf16.msra.mxu0 %v1628
    %2136 = vmatprep.subr.bf16.mxu0 %v1637
    %2137 = vmatpush1.bf16.msra.mxu0 %v1636
    %2138 = vmatprep.subr.bf16.mxu0 %v1645
    %2139 = vmatpush1.bf16.msra.mxu0 %v1644
    %2140 = vmatprep.subr.bf16.mxu0 %v1653
    %2141 = vmatpush1.bf16.msra.mxu0 %v1652
    %2142 = vmatprep.subr.bf16.mxu0 %v1661
    %2143 = vmatpush1.bf16.msra.mxu0 %v1660
    %2144 = vmatprep.subr.bf16.mxu0 %v1669
    %2145 = vmatpush1.bf16.msra.mxu0 %v1668
    %2146 = vmatprep.subr.bf16.mxu0 %v1677
    %2147 = vmatpush1.bf16.msra.mxu0 %v1676
    %2148 = vmatprep.subr.bf16.mxu0 %v1685
    %2149 = vmatpush1.bf16.msra.mxu0 %v1684
    %2150 = vmatprep.subr.bf16.mxu0 %v1693
    %2151 = vmatpush1.bf16.msra.mxu0 %v1692
    %2152 = vmatprep.subr.bf16.mxu0 %v1701
    %2153 = vmatpush1.bf16.msra.mxu0 %v1700
    %2154 = vmatprep.subr.bf16.mxu0 %v1709
    %2155 = vmatpush1.bf16.msra.mxu0 %v1708
    %2156 = vmatprep.subr.bf16.mxu0 %v1717
    %2157 = vmatpush1.bf16.msra.mxu0 %v1716
    %2158 = vmatprep.subr.bf16.mxu0 %v1725
    %2159 = vmatpush1.bf16.msra.mxu0 %v1724
    %2160 = vmatprep.subr.bf16.mxu0 %v1733
    %2161 = vmatpush1.bf16.msra.mxu0 %v1732
    %2162 = vmatprep.subr.bf16.mxu0 %v1741
    %2163 = vmatpush1.bf16.msra.mxu0 %v1740
    %2164 = vmatprep.mubr.bf16.mxu0 %v551
    %2165 = vmatmul.mubr.bf16.gmra.mrb[0].mxu0 %v550
    %v2166 = vpop.f32.mrb[0].mxu0
    %v2167 = vadd.f32 %v815, %v2166
    %v2168 = vpop.f32.mrb[0].mxu0
    %v2169 = vadd.f32 %v819, %v2168
    %v2170 = vpop.f32.mrb[0].mxu0
    %v2171 = vpop.f32.mrb[0].mxu0
    %2172 = vdwg.mxu0
    %2173 = vmatprep.subr.bf16.mxu0 %v1749
    %2174 = vmatpush1.bf16.msra.mxu0 %v1748
    %2175 = vmatprep.subr.bf16.mxu0 %v1757
    %2176 = vmatpush1.bf16.msra.mxu0 %v1756
    %2177 = vmatprep.subr.bf16.mxu0 %v1765
    %2178 = vmatpush1.bf16.msra.mxu0 %v1764
    %2179 = vmatprep.subr.bf16.mxu0 %v1773
    %2180 = vmatpush1.bf16.msra.mxu0 %v1772
    %2181 = vmatprep.subr.bf16.mxu0 %v1781
    %2182 = vmatpush1.bf16.msra.mxu0 %v1780
    %2183 = vmatprep.subr.bf16.mxu0 %v1789
    %2184 = vmatpush1.bf16.msra.mxu0 %v1788
    %2185 = vmatprep.subr.bf16.mxu0 %v1797
    %2186 = vmatpush1.bf16.msra.mxu0 %v1796
    %2187 = vmatprep.subr.bf16.mxu0 %v1805
    %2188 = vmatpush1.bf16.msra.mxu0 %v1804
    %2189 = vmatprep.subr.bf16.mxu0 %v1813
    %2190 = vmatpush1.bf16.msra.mxu0 %v1812
    %2191 = vmatprep.subr.bf16.mxu0 %v1821
    %2192 = vmatpush1.bf16.msra.mxu0 %v1820
    %2193 = vmatprep.subr.bf16.mxu0 %v1829
    %2194 = vmatpush1.bf16.msra.mxu0 %v1828
    %2195 = vmatprep.subr.bf16.mxu0 %v1837
    %2196 = vmatpush1.bf16.msra.mxu0 %v1836
    %2197 = vmatprep.subr.bf16.mxu0 %v1845
    %2198 = vmatpush1.bf16.msra.mxu0 %v1844
    %2199 = vmatprep.subr.bf16.mxu0 %v1853
    %2200 = vmatpush1.bf16.msra.mxu0 %v1852
    %2201 = vmatprep.subr.bf16.mxu0 %v1861
    %2202 = vmatpush1.bf16.msra.mxu0 %v1860
    %2203 = vmatprep.subr.bf16.mxu0 %v1869
    %2204 = vmatpush1.bf16.msra.mxu0 %v1868
    %2205 = vmatprep.mubr.bf16.mxu0 %v553
    %2206 = vmatmul.mubr.bf16.gmra.mrb[0].mxu0 %v552
    %v2207 = vpop.f32.mrb[0].mxu0
    %v2208 = vadd.f32 %v2167, %v2207
    %v2209 = vpop.f32.mrb[0].mxu0
    %v2210 = vadd.f32 %v2169, %v2209
    %v2211 = vpop.f32.mrb[0].mxu0
    %v2212 = vpop.f32.mrb[0].mxu0
    %2213 = vdwg.mxu0
    %2214 = vmatprep.subr.bf16.mxu0 %v1623
    %2215 = vmatpush1.bf16.msra.mxu0 %v1622
    %2216 = vmatprep.subr.bf16.mxu0 %v1631
    %2217 = vmatpush1.bf16.msra.mxu0 %v1630
    %2218 = vmatprep.subr.bf16.mxu0 %v1639
    %2219 = vmatpush1.bf16.msra.mxu0 %v1638
    %2220 = vmatprep.subr.bf16.mxu0 %v1647
    %2221 = vmatpush1.bf16.msra.mxu0 %v1646
    %2222 = vmatprep.subr.bf16.mxu0 %v1655
    %2223 = vmatpush1.bf16.msra.mxu0 %v1654
    %2224 = vmatprep.subr.bf16.mxu0 %v1663
    %2225 = vmatpush1.bf16.msra.mxu0 %v1662
    %2226 = vmatprep.subr.bf16.mxu0 %v1671
    %2227 = vmatpush1.bf16.msra.mxu0 %v1670
    %2228 = vmatprep.subr.bf16.mxu0 %v1679
    %2229 = vmatpush1.bf16.msra.mxu0 %v1678
    %2230 = vmatprep.subr.bf16.mxu0 %v1687
    %2231 = vmatpush1.bf16.msra.mxu0 %v1686
    %2232 = vmatprep.subr.bf16.mxu0 %v1695
    %2233 = vmatpush1.bf16.msra.mxu0 %v1694
    %2234 = vmatprep.subr.bf16.mxu0 %v1703
    %2235 = vmatpush1.bf16.msra.mxu0 %v1702
    %2236 = vmatprep.subr.bf16.mxu0 %v1711
    %2237 = vmatpush1.bf16.msra.mxu0 %v1710
    %2238 = vmatprep.subr.bf16.mxu0 %v1719
    %2239 = vmatpush1.bf16.msra.mxu0 %v1718
    %2240 = vmatprep.subr.bf16.mxu0 %v1727
    %2241 = vmatpush1.bf16.msra.mxu0 %v1726
    %2242 = vmatprep.subr.bf16.mxu0 %v1735
    %2243 = vmatpush1.bf16.msra.mxu0 %v1734
    %2244 = vmatprep.subr.bf16.mxu0 %v1743
    %2245 = vmatpush1.bf16.msra.mxu0 %v1742
    %2246 = vmatprep.mubr.bf16.mxu0 %v551
    %2247 = vmatmul.mubr.bf16.gmra.mrb[0].mxu0 %v550
    %v2248 = vpop.f32.mrb[0].mxu0
    %v2249 = vadd.f32 %v823, %v2248
    %v2250 = vpop.f32.mrb[0].mxu0
    %v2251 = vadd.f32 %v827, %v2250
    %v2252 = vpop.f32.mrb[0].mxu0
    %v2253 = vpop.f32.mrb[0].mxu0
    %2254 = vdwg.mxu0
    %2255 = vmatprep.subr.bf16.mxu0 %v1751
    %2256 = vmatpush1.bf16.msra.mxu0 %v1750
    %2257 = vmatprep.subr.bf16.mxu0 %v1759
    %2258 = vmatpush1.bf16.msra.mxu0 %v1758
    %2259 = vmatprep.subr.bf16.mxu0 %v1767
    %2260 = vmatpush1.bf16.msra.mxu0 %v1766
    %2261 = vmatprep.subr.bf16.mxu0 %v1775
    %2262 = vmatpush1.bf16.msra.mxu0 %v1774
    %2263 = vmatprep.subr.bf16.mxu0 %v1783
    %2264 = vmatpush1.bf16.msra.mxu0 %v1782
    %2265 = vmatprep.subr.bf16.mxu0 %v1791
    %2266 = vmatpush1.bf16.msra.mxu0 %v1790
    %2267 = vmatprep.subr.bf16.mxu0 %v1799
    %2268 = vmatpush1.bf16.msra.mxu0 %v1798
    %2269 = vmatprep.subr.bf16.mxu0 %v1807
    %2270 = vmatpush1.bf16.msra.mxu0 %v1806
    %2271 = vmatprep.subr.bf16.mxu0 %v1815
    %2272 = vmatpush1.bf16.msra.mxu0 %v1814
    %2273 = vmatprep.subr.bf16.mxu0 %v1823
    %2274 = vmatpush1.bf16.msra.mxu0 %v1822
    %2275 = vmatprep.subr.bf16.mxu0 %v1831
    %2276 = vmatpush1.bf16.msra.mxu0 %v1830
    %2277 = vmatprep.subr.bf16.mxu0 %v1839
    %2278 = vmatpush1.bf16.msra.mxu0 %v1838
    %2279 = vmatprep.subr.bf16.mxu0 %v1847
    %2280 = vmatpush1.bf16.msra.mxu0 %v1846
    %2281 = vmatprep.subr.bf16.mxu0 %v1855
    %2282 = vmatpush1.bf16.msra.mxu0 %v1854
    %2283 = vmatprep.subr.bf16.mxu0 %v1863
    %2284 = vmatpush1.bf16.msra.mxu0 %v1862
    %2285 = vmatprep.subr.bf16.mxu0 %v1871
    %2286 = vmatpush1.bf16.msra.mxu0 %v1870
    %2287 = vmatprep.mubr.bf16.mxu0 %v553
    %2288 = vmatmul.mubr.bf16.gmra.mrb[0].mxu0 %v552
    %v2289 = vpop.f32.mrb[0].mxu0
    %v2290 = vadd.f32 %v2249, %v2289
    %v2291 = vpop.f32.mrb[0].mxu0
    %v2292 = vadd.f32 %v2251, %v2291
    %v2293 = vpop.f32.mrb[0].mxu0
    %v2294 = vpop.f32.mrb[0].mxu0
    %2295 = vdwg.mxu0
    %2296 = vmatprep.subr.bf16.mxu0 %v1625
    %2297 = vmatpush1.bf16.msra.mxu0 %v1624
    %2298 = vmatprep.subr.bf16.mxu0 %v1633
    %2299 = vmatpush1.bf16.msra.mxu0 %v1632
    %2300 = vmatprep.subr.bf16.mxu0 %v1641
    %2301 = vmatpush1.bf16.msra.mxu0 %v1640
    %2302 = vmatprep.subr.bf16.mxu0 %v1649
    %2303 = vmatpush1.bf16.msra.mxu0 %v1648
    %2304 = vmatprep.subr.bf16.mxu0 %v1657
    %2305 = vmatpush1.bf16.msra.mxu0 %v1656
    %2306 = vmatprep.subr.bf16.mxu0 %v1665
    %2307 = vmatpush1.bf16.msra.mxu0 %v1664
    %2308 = vmatprep.subr.bf16.mxu0 %v1673
    %2309 = vmatpush1.bf16.msra.mxu0 %v1672
    %2310 = vmatprep.subr.bf16.mxu0 %v1681
    %2311 = vmatpush1.bf16.msra.mxu0 %v1680
    %2312 = vmatprep.subr.bf16.mxu0 %v1689
    %2313 = vmatpush1.bf16.msra.mxu0 %v1688
    %2314 = vmatprep.subr.bf16.mxu0 %v1697
    %2315 = vmatpush1.bf16.msra.mxu0 %v1696
    %2316 = vmatprep.subr.bf16.mxu0 %v1705
    %2317 = vmatpush1.bf16.msra.mxu0 %v1704
    %2318 = vmatprep.subr.bf16.mxu0 %v1713
    %2319 = vmatpush1.bf16.msra.mxu0 %v1712
    %2320 = vmatprep.subr.bf16.mxu0 %v1721
    %2321 = vmatpush1.bf16.msra.mxu0 %v1720
    %2322 = vmatprep.subr.bf16.mxu0 %v1729
    %2323 = vmatpush1.bf16.msra.mxu0 %v1728
    %2324 = vmatprep.subr.bf16.mxu0 %v1737
    %2325 = vmatpush1.bf16.msra.mxu0 %v1736
    %2326 = vmatprep.subr.bf16.mxu0 %v1745
    %2327 = vmatpush1.bf16.msra.mxu0 %v1744
    %2328 = vmatprep.mubr.bf16.mxu0 %v551
    %2329 = vmatmul.mubr.bf16.gmra.mrb[0].mxu0 %v550
    %v2330 = vpop.f32.mrb[0].mxu0
    %v2331 = vadd.f32 %v831, %v2330
    %v2332 = vpop.f32.mrb[0].mxu0
    %v2333 = vadd.f32 %v835, %v2332
    %v2334 = vpop.f32.mrb[0].mxu0
    %v2335 = vpop.f32.mrb[0].mxu0
    %2336 = vdwg.mxu0
    %2337 = vmatprep.subr.bf16.mxu0 %v1753
    %2338 = vmatpush1.bf16.msra.mxu0 %v1752
    %2339 = vmatprep.subr.bf16.mxu0 %v1761
    %2340 = vmatpush1.bf16.msra.mxu0 %v1760
    %2341 = vmatprep.subr.bf16.mxu0 %v1769
    %2342 = vmatpush1.bf16.msra.mxu0 %v1768
    %2343 = vmatprep.subr.bf16.mxu0 %v1777
    %2344 = vmatpush1.bf16.msra.mxu0 %v1776
    %2345 = vmatprep.subr.bf16.mxu0 %v1785
    %2346 = vmatpush1.bf16.msra.mxu0 %v1784
    %2347 = vmatprep.subr.bf16.mxu0 %v1793
    %2348 = vmatpush1.bf16.msra.mxu0 %v1792
    %2349 = vmatprep.subr.bf16.mxu0 %v1801
    %2350 = vmatpush1.bf16.msra.mxu0 %v1800
    %2351 = vmatprep.subr.bf16.mxu0 %v1809
    %2352 = vmatpush1.bf16.msra.mxu0 %v1808
    %2353 = vmatprep.subr.bf16.mxu0 %v1817
    %2354 = vmatpush1.bf16.msra.mxu0 %v1816
    %2355 = vmatprep.subr.bf16.mxu0 %v1825
    %2356 = vmatpush1.bf16.msra.mxu0 %v1824
    %2357 = vmatprep.subr.bf16.mxu0 %v1833
    %2358 = vmatpush1.bf16.msra.mxu0 %v1832
    %2359 = vmatprep.subr.bf16.mxu0 %v1841
    %2360 = vmatpush1.bf16.msra.mxu0 %v1840
    %2361 = vmatprep.subr.bf16.mxu0 %v1849
    %2362 = vmatpush1.bf16.msra.mxu0 %v1848
    %2363 = vmatprep.subr.bf16.mxu0 %v1857
    %2364 = vmatpush1.bf16.msra.mxu0 %v1856
    %2365 = vmatprep.subr.bf16.mxu0 %v1865
    %2366 = vmatpush1.bf16.msra.mxu0 %v1864
    %2367 = vmatprep.subr.bf16.mxu0 %v1873
    %2368 = vmatpush1.bf16.msra.mxu0 %v1872
    %2369 = vmatprep.mubr.bf16.mxu0 %v553
    %2370 = vmatmul.mubr.bf16.gmra.mrb[0].mxu0 %v552
    %v2371 = vpop.f32.mrb[0].mxu0
    %v2372 = vadd.f32 %v2331, %v2371
    %v2373 = vpop.f32.mrb[0].mxu0
    %v2374 = vadd.f32 %v2333, %v2373
    %v2375 = vpop.f32.mrb[0].mxu0
    %v2376 = vpop.f32.mrb[0].mxu0
    %2377 = vdwg.mxu0
    %2378 = vmatprep.subr.bf16.mxu0 %v1627
    %2379 = vmatpush1.bf16.msra.mxu0 %v1626
    %2380 = vmatprep.subr.bf16.mxu0 %v1635
    %2381 = vmatpush1.bf16.msra.mxu0 %v1634
    %2382 = vmatprep.subr.bf16.mxu0 %v1643
    %2383 = vmatpush1.bf16.msra.mxu0 %v1642
    %2384 = vmatprep.subr.bf16.mxu0 %v1651
    %2385 = vmatpush1.bf16.msra.mxu0 %v1650
    %2386 = vmatprep.subr.bf16.mxu0 %v1659
    %2387 = vmatpush1.bf16.msra.mxu0 %v1658
    %2388 = vmatprep.subr.bf16.mxu0 %v1667
    %2389 = vmatpush1.bf16.msra.mxu0 %v1666
    %2390 = vmatprep.subr.bf16.mxu0 %v1675
    %2391 = vmatpush1.bf16.msra.mxu0 %v1674
    %2392 = vmatprep.subr.bf16.mxu0 %v1683
    %2393 = vmatpush1.bf16.msra.mxu0 %v1682
    %2394 = vmatprep.subr.bf16.mxu0 %v1691
    %2395 = vmatpush1.bf16.msra.mxu0 %v1690
    %2396 = vmatprep.subr.bf16.mxu0 %v1699
    %2397 = vmatpush1.bf16.msra.mxu0 %v1698
    %2398 = vmatprep.subr.bf16.mxu0 %v1707
    %2399 = vmatpush1.bf16.msra.mxu0 %v1706
    %2400 = vmatprep.subr.bf16.mxu0 %v1715
    %2401 = vmatpush1.bf16.msra.mxu0 %v1714
    %2402 = vmatprep.subr.bf16.mxu0 %v1723
    %2403 = vmatpush1.bf16.msra.mxu0 %v1722
    %2404 = vmatprep.subr.bf16.mxu0 %v1731
    %2405 = vmatpush1.bf16.msra.mxu0 %v1730
    %2406 = vmatprep.subr.bf16.mxu0 %v1739
    %2407 = vmatpush1.bf16.msra.mxu0 %v1738
    %2408 = vmatprep.subr.bf16.mxu0 %v1747
    %2409 = vmatpush1.bf16.msra.mxu0 %v1746
    %2410 = vmatprep.mubr.bf16.mxu0 %v551
    %2411 = vmatmul.mubr.bf16.gmra.mrb[0].mxu0 %v550
    %v2412 = vpop.f32.mrb[0].mxu0
    %v2413 = vadd.f32 %v839, %v2412
    %v2414 = vpop.f32.mrb[0].mxu0
    %v2415 = vadd.f32 %v843, %v2414
    %v2416 = vpop.f32.mrb[0].mxu0
    %v2417 = vpop.f32.mrb[0].mxu0
    %2418 = vdwg.mxu0
    %2419 = vmatprep.subr.bf16.mxu0 %v1755
    %2420 = vmatpush1.bf16.msra.mxu0 %v1754
    %2421 = vmatprep.subr.bf16.mxu0 %v1763
    %2422 = vmatpush1.bf16.msra.mxu0 %v1762
    %2423 = vmatprep.subr.bf16.mxu0 %v1771
    %2424 = vmatpush1.bf16.msra.mxu0 %v1770
    %2425 = vmatprep.subr.bf16.mxu0 %v1779
    %2426 = vmatpush1.bf16.msra.mxu0 %v1778
    %2427 = vmatprep.subr.bf16.mxu0 %v1787
    %2428 = vmatpush1.bf16.msra.mxu0 %v1786
    %2429 = vmatprep.subr.bf16.mxu0 %v1795
    %2430 = vmatpush1.bf16.msra.mxu0 %v1794
    %2431 = vmatprep.subr.bf16.mxu0 %v1803
    %2432 = vmatpush1.bf16.msra.mxu0 %v1802
    %2433 = vmatprep.subr.bf16.mxu0 %v1811
    %2434 = vmatpush1.bf16.msra.mxu0 %v1810
    %2435 = vmatprep.subr.bf16.mxu0 %v1819
    %2436 = vmatpush1.bf16.msra.mxu0 %v1818
    %2437 = vmatprep.subr.bf16.mxu0 %v1827
    %2438 = vmatpush1.bf16.msra.mxu0 %v1826
    %2439 = vmatprep.subr.bf16.mxu0 %v1835
    %2440 = vmatpush1.bf16.msra.mxu0 %v1834
    %2441 = vmatprep.subr.bf16.mxu0 %v1843
    %2442 = vmatpush1.bf16.msra.mxu0 %v1842
    %2443 = vmatprep.subr.bf16.mxu0 %v1851
    %2444 = vmatpush1.bf16.msra.mxu0 %v1850
    %2445 = vmatprep.subr.bf16.mxu0 %v1859
    %2446 = vmatpush1.bf16.msra.mxu0 %v1858
    %2447 = vmatprep.subr.bf16.mxu0 %v1867
    %2448 = vmatpush1.bf16.msra.mxu0 %v1866
    %2449 = vmatprep.subr.bf16.mxu0 %v1875
    %2450 = vmatpush1.bf16.msra.mxu0 %v1874
    %2451 = vmatprep.mubr.bf16.mxu0 %v553
    %2452 = vmatmul.mubr.bf16.gmra.mrb[0].mxu0 %v552
    %v2453 = vpop.f32.mrb[0].mxu0
    %v2454 = vadd.f32 %v2413, %v2453
    %v2455 = vpop.f32.mrb[0].mxu0
    %v2456 = vadd.f32 %v2415, %v2455
    %v2457 = vpop.f32.mrb[0].mxu0
    %v2458 = vpop.f32.mrb[0].mxu0
    %2459 = vdwg.mxu0
    %v2460 = vmax.f32 %v2208, 0.0
    %v2461 = vmax.f32 %v2210, 0.0
    %v2462 = vmax.f32 %v2290, 0.0
    %v2463 = vmax.f32 %v2292, 0.0
    %v2464 = vmax.f32 %v2372, 0.0
    %v2465 = vmax.f32 %v2374, 0.0
    %v2466 = vmax.f32 %v2454, 0.0
    %v2467 = vmax.f32 %v2456, 0.0
    %v2468 = vpack.c.bf16 %v2460, %v2460
    %v2469 = vpack.c.bf16 %v2461, %v2461
    %v2470 = vpack.c.bf16 %v2462, %v2462
    %v2471 = vpack.c.bf16 %v2463, %v2463
    %v2472 = vpack.c.bf16 %v2464, %v2464
    %v2473 = vpack.c.bf16 %v2465, %v2465
    %v2474 = vpack.c.bf16 %v2466, %v2466
    %v2475 = vpack.c.bf16 %v2467, %v2467
    %v2476 = vld [vmem:[%s5] sm:$0xf]
    %v2477 = vld [vmem:[%s5 + $0x4] sm:$0xf]
    %v2478 = vld [vmem:[%s5 + $0x8] sm:$0xf]
    %v2479 = vld [vmem:[%s5 + $0xc] sm:$0xf]
    %v2480 = vld [vmem:[%s5 + $0x10] sm:$0xf]
    %v2481 = vld [vmem:[%s5 + $0x14] sm:$0xf]
    %v2482 = vld [vmem:[%s5 + $0x18] sm:$0xf]
    %v2483 = vld [vmem:[%s5 + $0x1c] sm:$0xf]
    %v2484 = vld [vmem:[%s5 + $0x20] sm:$0xf]
    %v2485 = vld [vmem:[%s5 + $0x24] sm:$0xf]
    %v2486 = vld [vmem:[%s5 + $0x28] sm:$0xf]
    %v2487 = vld [vmem:[%s5 + $0x2c] sm:$0xf]
    %v2488 = vld [vmem:[%s5 + $0x30] sm:$0xf]
    %v2489 = vld [vmem:[%s5 + $0x34] sm:$0xf]
    %v2490 = vld [vmem:[%s5 + $0x38] sm:$0xf]
    %v2491 = vld [vmem:[%s5 + $0x3c] sm:$0xf]
    %v2492 = vld [vmem:[%s5 + $0x40] sm:$0xf]
    %v2493 = vld [vmem:[%s5 + $0x44] sm:$0xf]
    %v2494 = vld [vmem:[%s5 + $0x48] sm:$0xf]
    %v2495 = vld [vmem:[%s5 + $0x4c] sm:$0xf]
    %v2496 = vld [vmem:[%s5 + $0x50] sm:$0xf]
    %v2497 = vld [vmem:[%s5 + $0x54] sm:$0xf]
    %v2498 = vld [vmem:[%s5 + $0x58] sm:$0xf]
    %v2499 = vld [vmem:[%s5 + $0x5c] sm:$0xf]
    %v2500 = vld [vmem:[%s5 + $0x60] sm:$0xf]
    %v2501 = vld [vmem:[%s5 + $0x64] sm:$0xf]
    %v2502 = vld [vmem:[%s5 + $0x68] sm:$0xf]
    %v2503 = vld [vmem:[%s5 + $0x6c] sm:$0xf]
    %v2504 = vld [vmem:[%s5 + $0x70] sm:$0xf]
    %v2505 = vld [vmem:[%s5 + $0x74] sm:$0xf]
    %v2506 = vld [vmem:[%s5 + $0x78] sm:$0xf]
    %v2507 = vld [vmem:[%s5 + $0x7c] sm:$0xf]
    %v2508 = vld [vmem:[%s5 + $0x80] sm:$0xf]
    %v2509 = vld [vmem:[%s5 + $0x84] sm:$0xf]
    %v2510 = vld [vmem:[%s5 + $0x88] sm:$0xf]
    %v2511 = vld [vmem:[%s5 + $0x8c] sm:$0xf]
    %v2512 = vld [vmem:[%s5 + $0x90] sm:$0xf]
    %v2513 = vld [vmem:[%s5 + $0x94] sm:$0xf]
    %v2514 = vld [vmem:[%s5 + $0x98] sm:$0xf]
    %v2515 = vld [vmem:[%s5 + $0x9c] sm:$0xf]
    %v2516 = vld [vmem:[%s5 + $0xa0] sm:$0xf]
    %v2517 = vld [vmem:[%s5 + $0xa4] sm:$0xf]
    %v2518 = vld [vmem:[%s5 + $0xa8] sm:$0xf]
    %v2519 = vld [vmem:[%s5 + $0xac] sm:$0xf]
    %v2520 = vld [vmem:[%s5 + $0xb0] sm:$0xf]
    %v2521 = vld [vmem:[%s5 + $0xb4] sm:$0xf]
    %v2522 = vld [vmem:[%s5 + $0xb8] sm:$0xf]
    %v2523 = vld [vmem:[%s5 + $0xbc] sm:$0xf]
    %v2524 = vld [vmem:[%s5 + $0xc0] sm:$0xf]
    %v2525 = vld [vmem:[%s5 + $0xc4] sm:$0xf]
    %v2526 = vld [vmem:[%s5 + $0xc8] sm:$0xf]
    %v2527 = vld [vmem:[%s5 + $0xcc] sm:$0xf]
    %v2528 = vld [vmem:[%s5 + $0xd0] sm:$0xf]
    %v2529 = vld [vmem:[%s5 + $0xd4] sm:$0xf]
    %v2530 = vld [vmem:[%s5 + $0xd8] sm:$0xf]
    %v2531 = vld [vmem:[%s5 + $0xdc] sm:$0xf]
    %v2532 = vld [vmem:[%s5 + $0xe0] sm:$0xf]
    %v2533 = vld [vmem:[%s5 + $0xe4] sm:$0xf]
    %v2534 = vld [vmem:[%s5 + $0xe8] sm:$0xf]
    %v2535 = vld [vmem:[%s5 + $0xec] sm:$0xf]
    %v2536 = vld [vmem:[%s5 + $0xf0] sm:$0xf]
    %v2537 = vld [vmem:[%s5 + $0xf4] sm:$0xf]
    %v2538 = vld [vmem:[%s5 + $0xf8] sm:$0xf]
    %v2539 = vld [vmem:[%s5 + $0xfc] sm:$0xf]
    %v2540 = vld [vmem:[%s5 + $0x100] sm:$0xf]
    %v2541 = vld [vmem:[%s5 + $0x104] sm:$0xf]
    %v2542 = vld [vmem:[%s5 + $0x108] sm:$0xf]
    %v2543 = vld [vmem:[%s5 + $0x10c] sm:$0xf]
    %v2544 = vld [vmem:[%s5 + $0x110] sm:$0xf]
    %v2545 = vld [vmem:[%s5 + $0x114] sm:$0xf]
    %v2546 = vld [vmem:[%s5 + $0x118] sm:$0xf]
    %v2547 = vld [vmem:[%s5 + $0x11c] sm:$0xf]
    %v2548 = vld [vmem:[%s5 + $0x120] sm:$0xf]
    %v2549 = vld [vmem:[%s5 + $0x124] sm:$0xf]
    %v2550 = vld [vmem:[%s5 + $0x128] sm:$0xf]
    %v2551 = vld [vmem:[%s5 + $0x12c] sm:$0xf]
    %v2552 = vld [vmem:[%s5 + $0x130] sm:$0xf]
    %v2553 = vld [vmem:[%s5 + $0x134] sm:$0xf]
    %v2554 = vld [vmem:[%s5 + $0x138] sm:$0xf]
    %v2555 = vld [vmem:[%s5 + $0x13c] sm:$0xf]
    %v2556 = vld [vmem:[%s5 + $0x140] sm:$0xf]
    %v2557 = vld [vmem:[%s5 + $0x144] sm:$0xf]
    %v2558 = vld [vmem:[%s5 + $0x148] sm:$0xf]
    %v2559 = vld [vmem:[%s5 + $0x14c] sm:$0xf]
    %v2560 = vld [vmem:[%s5 + $0x150] sm:$0xf]
    %v2561 = vld [vmem:[%s5 + $0x154] sm:$0xf]
    %v2562 = vld [vmem:[%s5 + $0x158] sm:$0xf]
    %v2563 = vld [vmem:[%s5 + $0x15c] sm:$0xf]
    %v2564 = vld [vmem:[%s5 + $0x160] sm:$0xf]
    %v2565 = vld [vmem:[%s5 + $0x164] sm:$0xf]
    %v2566 = vld [vmem:[%s5 + $0x168] sm:$0xf]
    %v2567 = vld [vmem:[%s5 + $0x16c] sm:$0xf]
    %v2568 = vld [vmem:[%s5 + $0x170] sm:$0xf]
    %v2569 = vld [vmem:[%s5 + $0x174] sm:$0xf]
    %v2570 = vld [vmem:[%s5 + $0x178] sm:$0xf]
    %v2571 = vld [vmem:[%s5 + $0x17c] sm:$0xf]
    %v2572 = vld [vmem:[%s5 + $0x180] sm:$0xf]
    %v2573 = vld [vmem:[%s5 + $0x184] sm:$0xf]
    %v2574 = vld [vmem:[%s5 + $0x188] sm:$0xf]
    %v2575 = vld [vmem:[%s5 + $0x18c] sm:$0xf]
    %v2576 = vld [vmem:[%s5 + $0x190] sm:$0xf]
    %v2577 = vld [vmem:[%s5 + $0x194] sm:$0xf]
    %v2578 = vld [vmem:[%s5 + $0x198] sm:$0xf]
    %v2579 = vld [vmem:[%s5 + $0x19c] sm:$0xf]
    %v2580 = vld [vmem:[%s5 + $0x1a0] sm:$0xf]
    %v2581 = vld [vmem:[%s5 + $0x1a4] sm:$0xf]
    %v2582 = vld [vmem:[%s5 + $0x1a8] sm:$0xf]
    %v2583 = vld [vmem:[%s5 + $0x1ac] sm:$0xf]
    %v2584 = vld [vmem:[%s5 + $0x1b0] sm:$0xf]
    %v2585 = vld [vmem:[%s5 + $0x1b4] sm:$0xf]
    %v2586 = vld [vmem:[%s5 + $0x1b8] sm:$0xf]
    %v2587 = vld [vmem:[%s5 + $0x1bc] sm:$0xf]
    %v2588 = vld [vmem:[%s5 + $0x1c0] sm:$0xf]
    %v2589 = vld [vmem:[%s5 + $0x1c4] sm:$0xf]
    %v2590 = vld [vmem:[%s5 + $0x1c8] sm:$0xf]
    %v2591 = vld [vmem:[%s5 + $0x1cc] sm:$0xf]
    %v2592 = vld [vmem:[%s5 + $0x1d0] sm:$0xf]
    %v2593 = vld [vmem:[%s5 + $0x1d4] sm:$0xf]
    %v2594 = vld [vmem:[%s5 + $0x1d8] sm:$0xf]
    %v2595 = vld [vmem:[%s5 + $0x1dc] sm:$0xf]
    %v2596 = vld [vmem:[%s5 + $0x1e0] sm:$0xf]
    %v2597 = vld [vmem:[%s5 + $0x1e4] sm:$0xf]
    %v2598 = vld [vmem:[%s5 + $0x1e8] sm:$0xf]
    %v2599 = vld [vmem:[%s5 + $0x1ec] sm:$0xf]
    %v2600 = vld [vmem:[%s5 + $0x1f0] sm:$0xf]
    %v2601 = vld [vmem:[%s5 + $0x1f4] sm:$0xf]
    %v2602 = vld [vmem:[%s5 + $0x1f8] sm:$0xf]
    %v2603 = vld [vmem:[%s5 + $0x1fc] sm:$0xf]
    %v2604 = vld [vmem:[%s6] sm:$0x1]
    %v2606 = vlaneseq
    %v2607 = vshrl.u32 %v2606, 7
    %v2608 = vsub.s32 0, %v2607
    %v2609 = vrot.slane %v2604, %v2608
    %v2739 = vunpack.c.l.b16 %v2476
    %v2740 = vunpack.c.l.b16 %v2477
    %v2741 = vunpack.c.l.b16 %v2478
    %v2742 = vunpack.c.l.b16 %v2479
    %v2743 = vunpack.c.l.b16 %v2480
    %v2744 = vunpack.c.l.b16 %v2481
    %v2745 = vunpack.c.l.b16 %v2482
    %v2746 = vunpack.c.l.b16 %v2483
    %v2747 = vunpack.c.l.b16 %v2484
    %v2748 = vunpack.c.l.b16 %v2485
    %v2749 = vunpack.c.l.b16 %v2486
    %v2750 = vunpack.c.l.b16 %v2487
    %v2751 = vunpack.c.l.b16 %v2488
    %v2752 = vunpack.c.l.b16 %v2489
    %v2753 = vunpack.c.l.b16 %v2490
    %v2754 = vunpack.c.l.b16 %v2491
    %v2755 = vunpack.c.l.b16 %v2492
    %v2756 = vunpack.c.l.b16 %v2493
    %v2757 = vunpack.c.l.b16 %v2494
    %v2758 = vunpack.c.l.b16 %v2495
    %v2759 = vunpack.c.l.b16 %v2496
    %v2760 = vunpack.c.l.b16 %v2497
    %v2761 = vunpack.c.l.b16 %v2498
    %v2762 = vunpack.c.l.b16 %v2499
    %v2763 = vunpack.c.l.b16 %v2500
    %v2764 = vunpack.c.l.b16 %v2501
    %v2765 = vunpack.c.l.b16 %v2502
    %v2766 = vunpack.c.l.b16 %v2503
    %v2767 = vunpack.c.l.b16 %v2504
    %v2768 = vunpack.c.l.b16 %v2505
    %v2769 = vunpack.c.l.b16 %v2506
    %v2770 = vunpack.c.l.b16 %v2507
    %v2771 = vunpack.c.l.b16 %v2508
    %v2772 = vunpack.c.l.b16 %v2509
    %v2773 = vunpack.c.l.b16 %v2510
    %v2774 = vunpack.c.l.b16 %v2511
    %v2775 = vunpack.c.l.b16 %v2512
    %v2776 = vunpack.c.l.b16 %v2513
    %v2777 = vunpack.c.l.b16 %v2514
    %v2778 = vunpack.c.l.b16 %v2515
    %v2779 = vunpack.c.l.b16 %v2516
    %v2780 = vunpack.c.l.b16 %v2517
    %v2781 = vunpack.c.l.b16 %v2518
    %v2782 = vunpack.c.l.b16 %v2519
    %v2783 = vunpack.c.l.b16 %v2520
    %v2784 = vunpack.c.l.b16 %v2521
    %v2785 = vunpack.c.l.b16 %v2522
    %v2786 = vunpack.c.l.b16 %v2523
    %v2787 = vunpack.c.l.b16 %v2524
    %v2788 = vunpack.c.l.b16 %v2525
    %v2789 = vunpack.c.l.b16 %v2526
    %v2790 = vunpack.c.l.b16 %v2527
    %v2791 = vunpack.c.l.b16 %v2528
    %v2792 = vunpack.c.l.b16 %v2529
    %v2793 = vunpack.c.l.b16 %v2530
    %v2794 = vunpack.c.l.b16 %v2531
    %v2795 = vunpack.c.l.b16 %v2532
    %v2796 = vunpack.c.l.b16 %v2533
    %v2797 = vunpack.c.l.b16 %v2534
    %v2798 = vunpack.c.l.b16 %v2535
    %v2799 = vunpack.c.l.b16 %v2536
    %v2800 = vunpack.c.l.b16 %v2537
    %v2801 = vunpack.c.l.b16 %v2538
    %v2802 = vunpack.c.l.b16 %v2539
    %v2803 = vunpack.c.l.b16 %v2540
    %v2804 = vunpack.c.l.b16 %v2541
    %v2805 = vunpack.c.l.b16 %v2542
    %v2806 = vunpack.c.l.b16 %v2543
    %v2807 = vunpack.c.l.b16 %v2544
    %v2808 = vunpack.c.l.b16 %v2545
    %v2809 = vunpack.c.l.b16 %v2546
    %v2810 = vunpack.c.l.b16 %v2547
    %v2811 = vunpack.c.l.b16 %v2548
    %v2812 = vunpack.c.l.b16 %v2549
    %v2813 = vunpack.c.l.b16 %v2550
    %v2814 = vunpack.c.l.b16 %v2551
    %v2815 = vunpack.c.l.b16 %v2552
    %v2816 = vunpack.c.l.b16 %v2553
    %v2817 = vunpack.c.l.b16 %v2554
    %v2818 = vunpack.c.l.b16 %v2555
    %v2819 = vunpack.c.l.b16 %v2556
    %v2820 = vunpack.c.l.b16 %v2557
    %v2821 = vunpack.c.l.b16 %v2558
    %v2822 = vunpack.c.l.b16 %v2559
    %v2823 = vunpack.c.l.b16 %v2560
    %v2824 = vunpack.c.l.b16 %v2561
    %v2825 = vunpack.c.l.b16 %v2562
    %v2826 = vunpack.c.l.b16 %v2563
    %v2827 = vunpack.c.l.b16 %v2564
    %v2828 = vunpack.c.l.b16 %v2565
    %v2829 = vunpack.c.l.b16 %v2566
    %v2830 = vunpack.c.l.b16 %v2567
    %v2831 = vunpack.c.l.b16 %v2568
    %v2832 = vunpack.c.l.b16 %v2569
    %v2833 = vunpack.c.l.b16 %v2570
    %v2834 = vunpack.c.l.b16 %v2571
    %v2835 = vunpack.c.l.b16 %v2572
    %v2836 = vunpack.c.l.b16 %v2573
    %v2837 = vunpack.c.l.b16 %v2574
    %v2838 = vunpack.c.l.b16 %v2575
    %v2839 = vunpack.c.l.b16 %v2576
    %v2840 = vunpack.c.l.b16 %v2577
    %v2841 = vunpack.c.l.b16 %v2578
    %v2842 = vunpack.c.l.b16 %v2579
    %v2843 = vunpack.c.l.b16 %v2580
    %v2844 = vunpack.c.l.b16 %v2581
    %v2845 = vunpack.c.l.b16 %v2582
    %v2846 = vunpack.c.l.b16 %v2583
    %v2847 = vunpack.c.l.b16 %v2584
    %v2848 = vunpack.c.l.b16 %v2585
    %v2849 = vunpack.c.l.b16 %v2586
    %v2850 = vunpack.c.l.b16 %v2587
    %v2851 = vunpack.c.l.b16 %v2588
    %v2852 = vunpack.c.l.b16 %v2589
    %v2853 = vunpack.c.l.b16 %v2590
    %v2854 = vunpack.c.l.b16 %v2591
    %v2855 = vunpack.c.l.b16 %v2592
    %v2856 = vunpack.c.l.b16 %v2593
    %v2857 = vunpack.c.l.b16 %v2594
    %v2858 = vunpack.c.l.b16 %v2595
    %v2859 = vunpack.c.l.b16 %v2596
    %v2860 = vunpack.c.l.b16 %v2597
    %v2861 = vunpack.c.l.b16 %v2598
    %v2862 = vunpack.c.l.b16 %v2599
    %v2863 = vunpack.c.l.b16 %v2600
    %v2864 = vunpack.c.l.b16 %v2601
    %v2865 = vunpack.c.l.b16 %v2602
    %v2866 = vunpack.c.l.b16 %v2603
    %v2867 = vpack.c.b16 %v2740, %v2739
    %v2868 = vpack.c.b16 %v2742, %v2741
    %v2869 = vpack.c.b16 %v2744, %v2743
    %v2870 = vpack.c.b16 %v2746, %v2745
    %v2871 = vpack.c.b16 %v2748, %v2747
    %v2872 = vpack.c.b16 %v2750, %v2749
    %v2873 = vpack.c.b16 %v2752, %v2751
    %v2874 = vpack.c.b16 %v2754, %v2753
    %v2875 = vpack.c.b16 %v2756, %v2755
    %v2876 = vpack.c.b16 %v2758, %v2757
    %v2877 = vpack.c.b16 %v2760, %v2759
    %v2878 = vpack.c.b16 %v2762, %v2761
    %v2879 = vpack.c.b16 %v2764, %v2763
    %v2880 = vpack.c.b16 %v2766, %v2765
    %v2881 = vpack.c.b16 %v2768, %v2767
    %v2882 = vpack.c.b16 %v2770, %v2769
    %v2883 = vpack.c.b16 %v2772, %v2771
    %v2884 = vpack.c.b16 %v2774, %v2773
    %v2885 = vpack.c.b16 %v2776, %v2775
    %v2886 = vpack.c.b16 %v2778, %v2777
    %v2887 = vpack.c.b16 %v2780, %v2779
    %v2888 = vpack.c.b16 %v2782, %v2781
    %v2889 = vpack.c.b16 %v2784, %v2783
    %v2890 = vpack.c.b16 %v2786, %v2785
    %v2891 = vpack.c.b16 %v2788, %v2787
    %v2892 = vpack.c.b16 %v2790, %v2789
    %v2893 = vpack.c.b16 %v2792, %v2791
    %v2894 = vpack.c.b16 %v2794, %v2793
    %v2895 = vpack.c.b16 %v2796, %v2795
    %v2896 = vpack.c.b16 %v2798, %v2797
    %v2897 = vpack.c.b16 %v2800, %v2799
    %v2898 = vpack.c.b16 %v2802, %v2801
    %v2899 = vpack.c.b16 %v2804, %v2803
    %v2900 = vpack.c.b16 %v2806, %v2805
    %v2901 = vpack.c.b16 %v2808, %v2807
    %v2902 = vpack.c.b16 %v2810, %v2809
    %v2903 = vpack.c.b16 %v2812, %v2811
    %v2904 = vpack.c.b16 %v2814, %v2813
    %v2905 = vpack.c.b16 %v2816, %v2815
    %v2906 = vpack.c.b16 %v2818, %v2817
    %v2907 = vpack.c.b16 %v2820, %v2819
    %v2908 = vpack.c.b16 %v2822, %v2821
    %v2909 = vpack.c.b16 %v2824, %v2823
    %v2910 = vpack.c.b16 %v2826, %v2825
    %v2911 = vpack.c.b16 %v2828, %v2827
    %v2912 = vpack.c.b16 %v2830, %v2829
    %v2913 = vpack.c.b16 %v2832, %v2831
    %v2914 = vpack.c.b16 %v2834, %v2833
    %v2915 = vpack.c.b16 %v2836, %v2835
    %v2916 = vpack.c.b16 %v2838, %v2837
    %v2917 = vpack.c.b16 %v2840, %v2839
    %v2918 = vpack.c.b16 %v2842, %v2841
    %v2919 = vpack.c.b16 %v2844, %v2843
    %v2920 = vpack.c.b16 %v2846, %v2845
    %v2921 = vpack.c.b16 %v2848, %v2847
    %v2922 = vpack.c.b16 %v2850, %v2849
    %v2923 = vpack.c.b16 %v2852, %v2851
    %v2924 = vpack.c.b16 %v2854, %v2853
    %v2925 = vpack.c.b16 %v2856, %v2855
    %v2926 = vpack.c.b16 %v2858, %v2857
    %v2927 = vpack.c.b16 %v2860, %v2859
    %v2928 = vpack.c.b16 %v2862, %v2861
    %v2929 = vpack.c.b16 %v2864, %v2863
    %v2930 = vpack.c.b16 %v2866, %v2865
    %2995 = vmatprep.subr.bf16.mxu0 0
    %2996 = vmatpush1.bf16.msra.mxu0 %v2867
    %2997 = vmatprep.subr.bf16.mxu0 0
    %2998 = vmatpush1.bf16.msra.mxu0 %v2868
    %2999 = vmatprep.subr.bf16.mxu0 0
    %3000 = vmatpush1.bf16.msra.mxu0 %v2869
    %3001 = vmatprep.subr.bf16.mxu0 0
    %3002 = vmatpush1.bf16.msra.mxu0 %v2870
    %3003 = vmatprep.subr.bf16.mxu0 0
    %3004 = vmatpush1.bf16.msra.mxu0 %v2871
    %3005 = vmatprep.subr.bf16.mxu0 0
    %3006 = vmatpush1.bf16.msra.mxu0 %v2872
    %3007 = vmatprep.subr.bf16.mxu0 0
    %3008 = vmatpush1.bf16.msra.mxu0 %v2873
    %3009 = vmatprep.subr.bf16.mxu0 0
    %3010 = vmatpush1.bf16.msra.mxu0 %v2874
    %3011 = vmatprep.subr.bf16.mxu0 0
    %3012 = vmatpush1.bf16.msra.mxu0 %v2875
    %3013 = vmatprep.subr.bf16.mxu0 0
    %3014 = vmatpush1.bf16.msra.mxu0 %v2876
    %3015 = vmatprep.subr.bf16.mxu0 0
    %3016 = vmatpush1.bf16.msra.mxu0 %v2877
    %3017 = vmatprep.subr.bf16.mxu0 0
    %3018 = vmatpush1.bf16.msra.mxu0 %v2878
    %3019 = vmatprep.subr.bf16.mxu0 0
    %3020 = vmatpush1.bf16.msra.mxu0 %v2879
    %3021 = vmatprep.subr.bf16.mxu0 0
    %3022 = vmatpush1.bf16.msra.mxu0 %v2880
    %3023 = vmatprep.subr.bf16.mxu0 0
    %3024 = vmatpush1.bf16.msra.mxu0 %v2881
    %3025 = vmatprep.subr.bf16.mxu0 0
    %3026 = vmatpush1.bf16.msra.mxu0 %v2882
    %3027 = vmatprep.mubr.bf16.mxu0 %v2469
    %3028 = vmatmul.mubr.bf16.gmra.mrb[0].mxu0 %v2468
    %v3029 = vpop.f32.mrb[0].mxu0
    %v3030 = vadd.f32 %v2609, %v3029
    %v3031 = vpop.f32.mrb[0].mxu0
    %v3032 = vpop.f32.mrb[0].mxu0
    %v3033 = vpop.f32.mrb[0].mxu0
    %3034 = vdwg.mxu0
    %3035 = vmatprep.subr.bf16.mxu0 0
    %3036 = vmatpush1.bf16.msra.mxu0 %v2883
    %3037 = vmatprep.subr.bf16.mxu0 0
    %3038 = vmatpush1.bf16.msra.mxu0 %v2884
    %3039 = vmatprep.subr.bf16.mxu0 0
    %3040 = vmatpush1.bf16.msra.mxu0 %v2885
    %3041 = vmatprep.subr.bf16.mxu0 0
    %3042 = vmatpush1.bf16.msra.mxu0 %v2886
    %3043 = vmatprep.subr.bf16.mxu0 0
    %3044 = vmatpush1.bf16.msra.mxu0 %v2887
    %3045 = vmatprep.subr.bf16.mxu0 0
    %3046 = vmatpush1.bf16.msra.mxu0 %v2888
    %3047 = vmatprep.subr.bf16.mxu0 0
    %3048 = vmatpush1.bf16.msra.mxu0 %v2889
    %3049 = vmatprep.subr.bf16.mxu0 0
    %3050 = vmatpush1.bf16.msra.mxu0 %v2890
    %3051 = vmatprep.subr.bf16.mxu0 0
    %3052 = vmatpush1.bf16.msra.mxu0 %v2891
    %3053 = vmatprep.subr.bf16.mxu0 0
    %3054 = vmatpush1.bf16.msra.mxu0 %v2892
    %3055 = vmatprep.subr.bf16.mxu0 0
    %3056 = vmatpush1.bf16.msra.mxu0 %v2893
    %3057 = vmatprep.subr.bf16.mxu0 0
    %3058 = vmatpush1.bf16.msra.mxu0 %v2894
    %3059 = vmatprep.subr.bf16.mxu0 0
    %3060 = vmatpush1.bf16.msra.mxu0 %v2895
    %3061 = vmatprep.subr.bf16.mxu0 0
    %3062 = vmatpush1.bf16.msra.mxu0 %v2896
    %3063 = vmatprep.subr.bf16.mxu0 0
    %3064 = vmatpush1.bf16.msra.mxu0 %v2897
    %3065 = vmatprep.subr.bf16.mxu0 0
    %3066 = vmatpush1.bf16.msra.mxu0 %v2898
    %3067 = vmatprep.mubr.bf16.mxu0 %v2471
    %3068 = vmatmul.mubr.bf16.gmra.mrb[0].mxu0 %v2470
    %v3069 = vpop.f32.mrb[0].mxu0
    %v3070 = vadd.f32 %v3030, %v3069
    %v3071 = vpop.f32.mrb[0].mxu0
    %v3072 = vpop.f32.mrb[0].mxu0
    %v3073 = vpop.f32.mrb[0].mxu0
    %3074 = vdwg.mxu0
    %3075 = vmatprep.subr.bf16.mxu0 0
    %3076 = vmatpush1.bf16.msra.mxu0 %v2899
    %3077 = vmatprep.subr.bf16.mxu0 0
    %3078 = vmatpush1.bf16.msra.mxu0 %v2900
    %3079 = vmatprep.subr.bf16.mxu0 0
    %3080 = vmatpush1.bf16.msra.mxu0 %v2901
    %3081 = vmatprep.subr.bf16.mxu0 0
    %3082 = vmatpush1.bf16.msra.mxu0 %v2902
    %3083 = vmatprep.subr.bf16.mxu0 0
    %3084 = vmatpush1.bf16.msra.mxu0 %v2903
    %3085 = vmatprep.subr.bf16.mxu0 0
    %3086 = vmatpush1.bf16.msra.mxu0 %v2904
    %3087 = vmatprep.subr.bf16.mxu0 0
    %3088 = vmatpush1.bf16.msra.mxu0 %v2905
    %3089 = vmatprep.subr.bf16.mxu0 0
    %3090 = vmatpush1.bf16.msra.mxu0 %v2906
    %3091 = vmatprep.subr.bf16.mxu0 0
    %3092 = vmatpush1.bf16.msra.mxu0 %v2907
    %3093 = vmatprep.subr.bf16.mxu0 0
    %3094 = vmatpush1.bf16.msra.mxu0 %v2908
    %3095 = vmatprep.subr.bf16.mxu0 0
    %3096 = vmatpush1.bf16.msra.mxu0 %v2909
    %3097 = vmatprep.subr.bf16.mxu0 0
    %3098 = vmatpush1.bf16.msra.mxu0 %v2910
    %3099 = vmatprep.subr.bf16.mxu0 0
    %3100 = vmatpush1.bf16.msra.mxu0 %v2911
    %3101 = vmatprep.subr.bf16.mxu0 0
    %3102 = vmatpush1.bf16.msra.mxu0 %v2912
    %3103 = vmatprep.subr.bf16.mxu0 0
    %3104 = vmatpush1.bf16.msra.mxu0 %v2913
    %3105 = vmatprep.subr.bf16.mxu0 0
    %3106 = vmatpush1.bf16.msra.mxu0 %v2914
    %3107 = vmatprep.mubr.bf16.mxu0 %v2473
    %3108 = vmatmul.mubr.bf16.gmra.mrb[0].mxu0 %v2472
    %v3109 = vpop.f32.mrb[0].mxu0
    %v3110 = vadd.f32 %v3070, %v3109
    %v3111 = vpop.f32.mrb[0].mxu0
    %v3112 = vpop.f32.mrb[0].mxu0
    %v3113 = vpop.f32.mrb[0].mxu0
    %3114 = vdwg.mxu0
    %3115 = vmatprep.subr.bf16.mxu0 0
    %3116 = vmatpush1.bf16.msra.mxu0 %v2915
    %3117 = vmatprep.subr.bf16.mxu0 0
    %3118 = vmatpush1.bf16.msra.mxu0 %v2916
    %3119 = vmatprep.subr.bf16.mxu0 0
    %3120 = vmatpush1.bf16.msra.mxu0 %v2917
    %3121 = vmatprep.subr.bf16.mxu0 0
    %3122 = vmatpush1.bf16.msra.mxu0 %v2918
    %3123 = vmatprep.subr.bf16.mxu0 0
    %3124 = vmatpush1.bf16.msra.mxu0 %v2919
    %3125 = vmatprep.subr.bf16.mxu0 0
    %3126 = vmatpush1.bf16.msra.mxu0 %v2920
    %3127 = vmatprep.subr.bf16.mxu0 0
    %3128 = vmatpush1.bf16.msra.mxu0 %v2921
    %3129 = vmatprep.subr.bf16.mxu0 0
    %3130 = vmatpush1.bf16.msra.mxu0 %v2922
    %3131 = vmatprep.subr.bf16.mxu0 0
    %3132 = vmatpush1.bf16.msra.mxu0 %v2923
    %3133 = vmatprep.subr.bf16.mxu0 0
    %3134 = vmatpush1.bf16.msra.mxu0 %v2924
    %3135 = vmatprep.subr.bf16.mxu0 0
    %3136 = vmatpush1.bf16.msra.mxu0 %v2925
    %3137 = vmatprep.subr.bf16.mxu0 0
    %3138 = vmatpush1.bf16.msra.mxu0 %v2926
    %3139 = vmatprep.subr.bf16.mxu0 0
    %3140 = vmatpush1.bf16.msra.mxu0 %v2927
    %3141 = vmatprep.subr.bf16.mxu0 0
    %3142 = vmatpush1.bf16.msra.mxu0 %v2928
    %3143 = vmatprep.subr.bf16.mxu0 0
    %3144 = vmatpush1.bf16.msra.mxu0 %v2929
    %3145 = vmatprep.subr.bf16.mxu0 0
    %3146 = vmatpush1.bf16.msra.mxu0 %v2930
    %3147 = vmatprep.mubr.bf16.mxu0 %v2475
    %3148 = vmatmul.mubr.bf16.gmra.mrb[0].mxu0 %v2474
    %v3149 = vpop.f32.mrb[0].mxu0
    %v3150 = vadd.f32 %v3110, %v3149
    %v3151 = vpop.f32.mrb[0].mxu0
    %v3152 = vpop.f32.mrb[0].mxu0
    %v3153 = vpop.f32.mrb[0].mxu0
    %3154 = vdwg.mxu0
    %vm3155 = vcmask 97280
    %v3156 = vsel %vm3155, %v3150, -inf
    %3157 = vmax.xlane.f32.xlu0 %v3156
    %v3158 = vpop.xlane.xlu0 %3157
    %v3159 = vlaneseq
    %v3160 = vand.u32 %v3159, 127
    %vm3161 = vcmp.eq.f32.partialorder %v3150, %v3158
    %v3162 = vsel %vm3161, %v3160, 12
    %v3163 = vsel %vm3155, %v3162, 2147483647
    %v3164 = vand.u32 %v3163, 65535
    %v3165 = vshra.s32 %v3163, 16
    %v3166 = vcvt.s32.f32 %v3164
    %v3167 = vcvt.s32.f32 %v3165
    %3168 = vmin.xlane.f32.xlu0 %v3167
    %v3169 = vpop.xlane.xlu0 %3168
    %vm3170 = vcmp.eq.f32.partialorder %v3167, %v3169
    %v3171 = vsel %vm3170, %v3166, inf
    %3172 = vmin.xlane.f32.xlu0 %v3171
    %v3173 = vpop.xlane.xlu0 %3172
    %v3174 = vcvt.f32.s32 %v3173
    %v3175 = vcvt.f32.s32 %v3169
    %v3176 = vshll.u32 %v3175, 16
    %v3177 = vadd.s32 %v3176, %v3174
    %v3178 = vadd.s32 %v3177, 3
    %v3179 = vcvt.s32.f32 %v3178
    %v3180 = vmax.f32 %v3150, 0.0
    %v3181 = vmin.f32 %v3180, 1.0
    %v3182 = vmul.f32 %v3181, 256.0
    %vm3183 = vcmp.eq.s32.totalorder %v3160, 0
    %3185 = vset.pattern.permute.xlu0 12
    %3186 = vperm.xlu0 %3185, %v3182
    %v3187 = vpop.permute.xlu0 %3186
    %v3189 = vsel %vm3183, %v3179, %v3187
    %3190 = vst [vmem:[#allocation5] sm:$0xff] %v3189
    // Predicated region
    $region34: #{tpu_custom_call.1} parent=1 // pred_check
      _
    $region35: #{tpu_custom_call.1} parent=1 // pred_check_branch
      %3192 = sbr.rel (0) target = $region37
    $region36: #{tpu_custom_call.1} parent=1 // pred_region
      %s3194 = ssub.s32 128, 128
      %3195 = vsyncadd [#allocation4], %s3194
      %s3197 = sshll.u32 [#allocation5], 4
      %s3198 = int_to_ptr.vmem [resolvable:$true] %s3197
      %3200 = dma.vmem_to_hbm [thread:$0]  %s3198, 128, %s7, [#allocation4]
    $region37: #{tpu_custom_call.1} parent=1 // pred_fallthru
      _
    // Predicated region
    $region38: #{tpu_custom_call.1} parent=1 // pred_check
      _
    $region39: #{tpu_custom_call.1} parent=1 // pred_check_branch
      %3202 = sbr.rel (0) target = $region41
    $region40: #{tpu_custom_call.1} parent=1 // pred_region
      %3203 = dma.done [#allocation4], 128
    $region41: #{tpu_custom_call.1} parent=1 // pred_fallthru
      _
    %3204 = vsyncpa [#allocation3], 1
    %3205 = vsyncpa [#allocation4], 1

</llo_original>
